<compile_context>
chip_gen: v7x
topology: tpu7x:2x2x1
jax: 0.10.0
libtpu: 0.0.40
codegen_flags: <defaults>
</compile_context>

<pallas_src>
import jax
import jax.numpy as jnp
import numpy as np
from jax.experimental import pallas as pl
from jax.experimental.pallas import tpu as pltpu


# ----------------------------------------------------------------------------
# Pallas fused kernel
# ----------------------------------------------------------------------------
def _full_spec(shape):
    nd = len(shape)
    return pl.BlockSpec(tuple(int(s) for s in shape),
                        lambda i, _nd=nd: (0,) * _nd)


def _make_fused_kernel(depth, batch, channels2, leaves0):
    """Kernel operand order:
       a0, [w(bf16, rows pre-permuted), R(bf16), Sel(f32)] * depth,
       fc_w(bf16, padded to 128 lanes), fc_b(f32, padded), out_ref
    """

    def kernel(*refs):
        out_ref = refs[-1]
        a = refs[0][...]                       # (B*L0, Cin0) f32, channels-last
        idx = 1
        l = leaves0
        for _ in range(depth):
            w_ref, r_ref, sel_ref = refs[idx:idx + 3]
            idx += 3
            cout = w_ref.shape[1]
            ld = cout // channels2
            half = l // 2

            # 1x1 Conv1d as channels-last matmul on the MXU (bf16 in, f32 acc).
            # Conv bias omitted: cancelled exactly by the BN mean subtraction.
            z = jnp.dot(a.astype(jnp.bfloat16), w_ref[...],
                        preferred_element_type=jnp.float32)
            n = z.shape[0]

            # BatchNorm1d (training mode) over all (batch, leaf) rows.
            # gamma=1 / beta=0 (module defaults) folded away; centered two-pass
            # variance kept for numerical stability.
            mean = jnp.sum(z, axis=0, keepdims=True) * (1.0 / n)
            d = z - mean
            var = jnp.sum(d * d, axis=0, keepdims=True) * (1.0 / n)
            zn = d * jax.lax.rsqrt(var + 1e-5)

            # LeakyReLU(0.01)
            y = jnp.maximum(zn, 0.01 * zn)

            # kd shuffle (torch view/index_select quirk reproduced exactly):
            #   per-batch block-diagonal gather (one batched MXU einsum),
            #   channel mask + per-(ld,C)-group sum (VPU),
            #   q halves concatenated along lanes (q-major physical channel
            #   order; compensated by host-side weight-row permutation of the
            #   next level's conv / final fc weights).
            y3 = y.reshape(batch, l, cout)
            g = jnp.einsum('bpl,blc->bpc', r_ref[...], y3.astype(jnp.bfloat16),
                           preferred_element_type=jnp.float32)   # (B, L, Cout)
            m = g * sel_ref[...]                                  # (B, L, Cout)
            v = m.reshape(batch, l, ld, channels2).sum(axis=-1)   # (B, L, ld)
            a = jnp.concatenate([v[:, :half, :], v[:, half:, :]],
                                axis=-1).reshape(batch * half, 2 * ld)
            l = half

        fc_w_ref, fc_b_ref = refs[idx], refs[idx + 1]
        # Lane-dense (padded-to-128) final Linear.
        out_ref[...] = (jnp.dot(a.astype(jnp.bfloat16), fc_w_ref[...],
                                preferred_element_type=jnp.float32)
                        + fc_b_ref[...])

    return kernel


# ----------------------------------------------------------------------------
# Host-side (plain JAX) precompute of the block-diagonal shuffle operators
# ----------------------------------------------------------------------------
def _shuffle_operators(cutdim, leaves, cout, channels2):
    """Per-batch operators reproducing, bug-for-bug, the torch sequence

        x.view(B, LD, C, L).view(B, LD, C*L)
        index_select(..., cutdim + arange(L)*C)     # quirky flat index
        .view(LD*2, L//2)

    With f = pos*C + cut[b, pos]:  c_src = f // L,  p_src = f % L, so
        gathered[b, p, :] = Y[b, p_src(b,p), :]          (R @ Y, per batch)
        value[b, p, ld]   = gathered[b, p, ld*C + c_src] (Sel mask + group sum)
    Returns:
        R   (B, L, L)    bf16 one-hot gather (exact in bf16)
        Sel (B, L, Cout) f32  0/1 channel mask
    """
    b, l = cutdim.shape
    assert l == leaves
    c = channels2
    cut = cutdim.astype(jnp.int32)
    pos = jnp.arange(l, dtype=jnp.int32)[None, :]
    f = pos * c + cut                                       # (B, L)
    c_src = f // l
    p_src = f % l
    col = jnp.arange(l, dtype=jnp.int32)[None, None, :]
    r = (p_src[:, :, None] == col).astype(jnp.bfloat16)     # (B, L, L)
    jmod = (jnp.arange(cout, dtype=jnp.int32) % c)[None, None, :]
    sel = (c_src[:, :, None] == jmod).astype(jnp.float32)   # (B, L, Cout)
    return r, sel


# ----------------------------------------------------------------------------
# Parameters + forward
# ----------------------------------------------------------------------------
def make_kdnet_params(key, depth=3, k=16, input_levels=3, channels2=4,
                      features=8):
    assert depth <= input_levels
    initial_leaf_dim = 2 ** (input_levels - depth)
    mult = 2  # max_pool = False
    current_channels = channels2 // 2 * initial_leaf_dim
    channels = (2 ** (np.arange(1, input_levels + 1) // 2) * features).tolist()

    gain = float(np.sqrt(2.0 / (1.0 + 0.01 ** 2)))  # calculate_gain('leaky_relu')
    convs = []
    for i in range(depth):
        out_channels = channels[i]
        cin = current_channels * mult
        cout = out_channels * channels2
        key, kw = jax.random.split(key)
        bound_w = gain * np.sqrt(6.0 / (cin + cout))    # xavier_uniform_
        w = jax.random.uniform(kw, (cin, cout), jnp.float32, -bound_w, bound_w)
        # NOTE: Conv1d bias omitted -- train-mode BatchNorm subtracts the
        # per-channel batch mean, which cancels any additive bias exactly.
        gamma = jnp.ones((cout,), jnp.float32)          # BatchNorm1d defaults
        beta = jnp.zeros((cout,), jnp.float32)
        convs.append((w, gamma, beta))
        current_channels = out_channels

    hidden_dims = current_channels * mult
    key, kw, kb = jax.random.split(key, 3)
    bound = 1.0 / np.sqrt(hidden_dims)
    fc_w = jax.random.uniform(kw, (hidden_dims, k), jnp.float32, -bound, bound)
    fc_b = jax.random.uniform(kb, (k,), jnp.float32, -bound, bound)

    params = dict(convs=convs, fc_w=fc_w, fc_b=fc_b)
    meta = dict(depth=depth, channels2=channels2, hidden_dims=hidden_dims,
                initial_leaf_dim=initial_leaf_dim)
    return params, meta


def kdnet_forward(params, meta, x, cutdims):
    depth = meta["depth"]
    c2 = meta["channels2"]
    # TODO(synk): the 4-D input branch in the reference references an undefined
    # `batch_size` (upstream bug) and the max_pool=True branch squeezes a
    # nonexistent dim 3; neither is reproduced (3-D input, max_pool=False).
    bsz, feat, leaves = x.shape
    assert leaves == 2 ** depth, "module assumes leaves == 2**depth"

    # channels-last 2D layout: rows = (batch, leaf) positions.
    a0 = jnp.transpose(x, (0, 2, 1)).reshape(bsz * leaves, feat)

    operands = [a0]
    flops = 0
    trans = 0
    l = leaves
    rows = bsz * leaves
    perm = None   # row permutation compensating the kernel's q-major channels
    for i in range(depth):
        w, _gamma, _beta = params["convs"][i]   # gamma=1/beta=0 folded away
        cin, cout = w.shape
        ld = cout // c2
        if perm is not None:
            # kernel emits physical channel j = (q-major) -> logical 2*j / 2*(j-ld)+1
            w = w[perm, :]
        r, sel = _shuffle_operators(cutdims[depth - i - 1], l, cout, c2)
        operands += [w.astype(jnp.bfloat16), r, sel]
        flops += 2 * rows * cin * cout          # conv matmul
        flops += 2 * bsz * l * l * cout         # block-diagonal gather einsum
        flops += 10 * rows * cout               # BN / act / mask / group-sum
        trans += cout                           # rsqrt per channel
        # physical->logical channel map of this level's output (q-major concat)
        perm = np.concatenate([2 * np.arange(ld), 2 * np.arange(ld) + 1])
        l //= 2
        rows = bsz * l

    hidden, k = params["fc_w"].shape
    kpad = 128   # lane-dense output: pad fc to 128 lanes, slice outside
    fc_w = params["fc_w"][perm, :]
    fc_w_p = jnp.pad(fc_w.astype(jnp.bfloat16), ((0, 0), (0, kpad - k)))
    fc_b_p = jnp.pad(params["fc_b"], (0, kpad - k)).reshape(1, kpad)
    operands += [fc_w_p, fc_b_p]
    flops += 2 * rows * hidden * kpad

    bytes_accessed = (sum(int(op.size) * op.dtype.itemsize for op in operands)
                      + rows * kpad * 4)
    # Explicit scoped-VMEM budget; scales with footprint, stays under the
    # v7x 64 MiB/TC ceiling (v5e/v6e have 128 MiB).
    vmem_limit = int(min(56 << 20, max(4 << 20, 8 * bytes_accessed)))

    # TODO(synk): at realistic KDNet sizes (batch*leaves >> VMEM) this
    # grid=(1,) whole-array design must become a row-tiled "parallel" grid
    # with a two-pass BatchNorm reduction (pass 1: conv + partial sum/sumsq
    # accumulators; pass 2: normalize + LeakyReLU + shuffle) or a core_map +
    # VMEM_SHARED stats exchange, so both v7x TensorCores are used and
    # operand DMAs pipeline with compute.  At these demo sizes (16 rows total)
    # tiling is degenerate and everything is trivially VMEM-resident.
    out = pl.pallas_call(
        _make_fused_kernel(depth, bsz, c2, leaves),
        out_shape=jax.ShapeDtypeStruct((rows, kpad), jnp.float32),
        grid=(1,),
        in_specs=[_full_spec(op.shape) for op in operands],
        out_specs=_full_spec((rows, kpad)),
        compiler_params=pltpu.CompilerParams(
            dimension_semantics=("arbitrary",),
            vmem_limit_bytes=vmem_limit),
        cost_estimate=pl.CostEstimate(flops=int(flops),
                                      transcendentals=int(trans),
                                      bytes_accessed=int(bytes_accessed)),
    )(*operands)
    return out[:, :k]


# ----------------------------------------------------------------------------
# Plain-JAX reference (original torch view/index_select semantics) for check
# ----------------------------------------------------------------------------
def _reference_forward(params, meta, x, cutdims):
    depth, c2 = meta["depth"], meta["channels2"]
    for i in range(depth):
        w, gamma, beta = params["convs"][i]
        bsz, feat, leaves = x.shape
        x2d = jnp.transpose(x, (0, 2, 1)).reshape(bsz * leaves, feat)
        z = x2d @ w
        mean = jnp.mean(z, axis=0, keepdims=True)
        var = jnp.mean((z - mean) ** 2, axis=0, keepdims=True)
        zn = (z - mean) * jax.lax.rsqrt(var + 1e-5) * gamma + beta
        y2d = jnp.where(zn >= 0.0, zn, 0.01 * zn)
        cout = w.shape[1]
        y = jnp.transpose(y2d.reshape(bsz, leaves, cout), (0, 2, 1))
        ldm = cout // c2
        yflat = y.reshape(bsz, ldm, c2 * leaves)
        sel = (cutdims[depth - i - 1].astype(jnp.int32)
               + jnp.arange(leaves, dtype=jnp.int32)[None, :] * c2)
        xi = jnp.take_along_axis(yflat, sel[:, None, :], axis=-1)
        x = xi.reshape(bsz, ldm * 2, leaves // 2)
    x_flat = x.reshape(-1, meta["hidden_dims"])
    return x_flat @ params["fc_w"] + params["fc_b"]


# ----------------------------------------------------------------------------
if __name__ == "__main__":
    DEPTH, K, INPUT_LEVELS, CHANNELS2, FEATURES = 3, 16, 3, 4, 8
    BATCH = 2

    key = jax.random.PRNGKey(0)
    key, kparam, kx = jax.random.split(key, 3)
    params, meta = make_kdnet_params(
        kparam, depth=DEPTH, k=K, input_levels=INPUT_LEVELS,
        channels2=CHANNELS2, features=FEATURES)

    # Input: (B, channels2 * initial_leaf_dim, 2**depth)
    x = jax.random.normal(
        kx, (BATCH, CHANNELS2 * meta["initial_leaf_dim"], 2 ** DEPTH),
        dtype=jnp.float32)

    # cutdims[j] has shape (B, 2**(j+1)), values in [0, channels2).
    cutdims = []
    for j in range(DEPTH):
        key, kc = jax.random.split(key)
        cutdims.append(
            jax.random.randint(kc, (BATCH, 2 ** (j + 1)), 0, CHANNELS2,
                               dtype=jnp.int32))

    fwd = jax.jit(lambda xx, cds: kdnet_forward(params, meta, xx, cds))
    out = jax.block_until_ready(fwd(x, cutdims))
    assert out.shape == (BATCH, K), out.shape

    # Check fused kernel against the plain-JAX bug-for-bug reference.
    ref = jax.block_until_ready(_reference_forward(params, meta, x, cutdims))
    np.testing.assert_allclose(np.asarray(out), np.asarray(ref),
                               rtol=5e-2, atol=5e-2)
    print("KERNEL_OK")
</pallas_src>

<mosaic_0001>
module attributes {stable_mosaic.version = 11 : i64} {
  func.func @kernel(%arg0: i32, %arg1: memref<16x4xf32, #tpu.memory_space<vmem>>, %arg2: memref<4x32xbf16, #tpu.memory_space<vmem>>, %arg3: memref<2x8x8xbf16, #tpu.memory_space<vmem>>, %arg4: memref<2x8x32xf32, #tpu.memory_space<vmem>>, %arg5: memref<16x64xbf16, #tpu.memory_space<vmem>>, %arg6: memref<2x4x4xbf16, #tpu.memory_space<vmem>>, %arg7: memref<2x4x64xf32, #tpu.memory_space<vmem>>, %arg8: memref<32x64xbf16, #tpu.memory_space<vmem>>, %arg9: memref<2x2x2xbf16, #tpu.memory_space<vmem>>, %arg10: memref<2x2x64xf32, #tpu.memory_space<vmem>>, %arg11: memref<32x128xbf16, #tpu.memory_space<vmem>>, %arg12: memref<1x128xf32, #tpu.memory_space<vmem>>, %arg13: memref<2x128xf32, #tpu.memory_space<vmem>>) attributes {dimension_semantics = [#tpu.dimension_semantics<arbitrary>], iteration_bounds = array<i64: 1>, scalar_prefetch = 0 : i64, scratch_operands = 0 : i64, tpu.core_type = #tpu.core_type<tc>, window_params = [{pipeline_mode = #tpu.pipeline_mode<synchronous>, transform_indices = @transform_0, window_bounds = array<i64: 16, 4>}, {pipeline_mode = #tpu.pipeline_mode<synchronous>, transform_indices = @transform_1, window_bounds = array<i64: 4, 32>}, {pipeline_mode = #tpu.pipeline_mode<synchronous>, transform_indices = @transform_2, window_bounds = array<i64: 2, 8, 8>}, {pipeline_mode = #tpu.pipeline_mode<synchronous>, transform_indices = @transform_3, window_bounds = array<i64: 2, 8, 32>}, {pipeline_mode = #tpu.pipeline_mode<synchronous>, transform_indices = @transform_4, window_bounds = array<i64: 16, 64>}, {pipeline_mode = #tpu.pipeline_mode<synchronous>, transform_indices = @transform_5, window_bounds = array<i64: 2, 4, 4>}, {pipeline_mode = #tpu.pipeline_mode<synchronous>, transform_indices = @transform_6, window_bounds = array<i64: 2, 4, 64>}, {pipeline_mode = #tpu.pipeline_mode<synchronous>, transform_indices = @transform_7, window_bounds = array<i64: 32, 64>}, {pipeline_mode = #tpu.pipeline_mode<synchronous>, transform_indices = @transform_8, window_bounds = array<i64: 2, 2, 2>}, {pipeline_mode = #tpu.pipeline_mode<synchronous>, transform_indices = @transform_9, window_bounds = array<i64: 2, 2, 64>}, {pipeline_mode = #tpu.pipeline_mode<synchronous>, transform_indices = @transform_10, window_bounds = array<i64: 32, 128>}, {pipeline_mode = #tpu.pipeline_mode<synchronous>, transform_indices = @transform_11, window_bounds = array<i64: 1, 128>}, {pipeline_mode = #tpu.pipeline_mode<synchronous>, transform_indices = @transform_12, window_bounds = array<i64: 2, 128>}]} {
    %c0 = arith.constant 0 : index
    %c0_0 = arith.constant 0 : index
    %0 = vector.load %arg1[%c0, %c0_0] : memref<16x4xf32, #tpu.memory_space<vmem>>, vector<16x4xf32>
    %1 = arith.truncf %0 : vector<16x4xf32> to vector<16x4xbf16>
    %c0_1 = arith.constant 0 : index
    %c0_2 = arith.constant 0 : index
    %2 = vector.load %arg2[%c0_1, %c0_2] : memref<4x32xbf16, #tpu.memory_space<vmem>>, vector<4x32xbf16>
    %cst = arith.constant dense<0.000000e+00> : vector<16x32xf32>
    %3 = tpu.matmul %1, %2, %cst {dimension_numbers = #tpu.dot_dimension_numbers<[1], [0], [0], [1], [0, 0, 1, 1], [], []>} : vector<16x4xbf16>, vector<4x32xbf16>, vector<16x32xf32> -> vector<16x32xf32>
    %cst_3 = arith.constant dense<0.000000e+00> : vector<32xf32>
    %4 = vector.multi_reduction <add>, %3, %cst_3 [0] : vector<16x32xf32> to vector<32xf32>
    %5 = vector.shape_cast %4 : vector<32xf32> to vector<1x32xf32>
    %cst_4 = arith.constant 6.250000e-02 : f32
    %6 = vector.broadcast %cst_4 : f32 to vector<1x32xf32>
    %7 = arith.mulf %5, %6 : vector<1x32xf32>
    %8 = vector.broadcast %7 : vector<1x32xf32> to vector<16x32xf32>
    %9 = arith.subf %3, %8 : vector<16x32xf32>
    %10 = arith.mulf %9, %9 : vector<16x32xf32>
    %cst_5 = arith.constant dense<0.000000e+00> : vector<32xf32>
    %11 = vector.multi_reduction <add>, %10, %cst_5 [0] : vector<16x32xf32> to vector<32xf32>
    %12 = vector.shape_cast %11 : vector<32xf32> to vector<1x32xf32>
    %cst_6 = arith.constant 6.250000e-02 : f32
    %13 = vector.broadcast %cst_6 : f32 to vector<1x32xf32>
    %14 = arith.mulf %12, %13 : vector<1x32xf32>
    %cst_7 = arith.constant 9.99999974E-6 : f32
    %15 = vector.broadcast %cst_7 : f32 to vector<1x32xf32>
    %16 = arith.addf %14, %15 : vector<1x32xf32>
    %17 = math.rsqrt %16 : vector<1x32xf32>
    %18 = vector.broadcast %17 : vector<1x32xf32> to vector<16x32xf32>
    %19 = arith.mulf %9, %18 : vector<16x32xf32>
    %cst_8 = arith.constant 0.00999999977 : f32
    %20 = vector.broadcast %cst_8 : f32 to vector<16x32xf32>
    %21 = arith.mulf %20, %19 : vector<16x32xf32>
    %22 = arith.maximumf %19, %21 : vector<16x32xf32>
    %23 = vector.shape_cast %22 : vector<16x32xf32> to vector<2x8x32xf32>
    %c0_9 = arith.constant 0 : index
    %c0_10 = arith.constant 0 : index
    %c0_11 = arith.constant 0 : index
    %24 = vector.load %arg3[%c0_9, %c0_10, %c0_11] : memref<2x8x8xbf16, #tpu.memory_space<vmem>>, vector<2x8x8xbf16>
    %25 = arith.truncf %23 : vector<2x8x32xf32> to vector<2x8x32xbf16>
    "tpu.trace_start"() <{level = 10 : i32, message = "bpl,blc->bpc"}> : () -> ()
    %cst_12 = arith.constant dense<0.000000e+00> : vector<2x8x32xf32>
    %26 = tpu.matmul %24, %25, %cst_12 {dimension_numbers = #tpu.dot_dimension_numbers<[2], [1], [1], [2], [0, 0, 0, 1, 1, 2], [0], [0]>} : vector<2x8x8xbf16>, vector<2x8x32xbf16>, vector<2x8x32xf32> -> vector<2x8x32xf32>
    "tpu.trace_stop"() : () -> ()
    %c0_13 = arith.constant 0 : index
    %c0_14 = arith.constant 0 : index
    %c0_15 = arith.constant 0 : index
    %27 = vector.load %arg4[%c0_13, %c0_14, %c0_15] : memref<2x8x32xf32, #tpu.memory_space<vmem>>, vector<2x8x32xf32>
    %28 = arith.mulf %26, %27 : vector<2x8x32xf32>
    %29 = vector.shape_cast %28 : vector<2x8x32xf32> to vector<2x8x8x4xf32>
    %cst_16 = arith.constant dense<0.000000e+00> : vector<2x8x8xf32>
    %30 = vector.multi_reduction <add>, %29, %cst_16 [3] : vector<2x8x8x4xf32> to vector<2x8x8xf32>
    %31 = vector.extract_strided_slice %30 {offsets = [0, 0, 0], sizes = [2, 4, 8], strides = [1, 1, 1]} : vector<2x8x8xf32> to vector<2x4x8xf32>
    %32 = vector.extract_strided_slice %30 {offsets = [0, 4, 0], sizes = [2, 4, 8], strides = [1, 1, 1]} : vector<2x8x8xf32> to vector<2x4x8xf32>
    %33 = tpu.concatenate %31, %32 in 2 : vector<2x4x8xf32>, vector<2x4x8xf32> -> vector<2x4x16xf32>
    %34 = vector.shape_cast %33 : vector<2x4x16xf32> to vector<8x16xf32>
    %35 = arith.truncf %34 : vector<8x16xf32> to vector<8x16xbf16>
    %c0_17 = arith.constant 0 : index
    %c0_18 = arith.constant 0 : index
    %36 = vector.load %arg5[%c0_17, %c0_18] : memref<16x64xbf16, #tpu.memory_space<vmem>>, vector<16x64xbf16>
    %cst_19 = arith.constant dense<0.000000e+00> : vector<8x64xf32>
    %37 = tpu.matmul %35, %36, %cst_19 {dimension_numbers = #tpu.dot_dimension_numbers<[1], [0], [0], [1], [0, 0, 1, 1], [], []>} : vector<8x16xbf16>, vector<16x64xbf16>, vector<8x64xf32> -> vector<8x64xf32>
    %cst_20 = arith.constant dense<0.000000e+00> : vector<64xf32>
    %38 = vector.multi_reduction <add>, %37, %cst_20 [0] : vector<8x64xf32> to vector<64xf32>
    %39 = vector.shape_cast %38 : vector<64xf32> to vector<1x64xf32>
    %cst_21 = arith.constant 1.250000e-01 : f32
    %40 = vector.broadcast %cst_21 : f32 to vector<1x64xf32>
    %41 = arith.mulf %39, %40 : vector<1x64xf32>
    %42 = vector.broadcast %41 : vector<1x64xf32> to vector<8x64xf32>
    %43 = arith.subf %37, %42 : vector<8x64xf32>
    %44 = arith.mulf %43, %43 : vector<8x64xf32>
    %cst_22 = arith.constant dense<0.000000e+00> : vector<64xf32>
    %45 = vector.multi_reduction <add>, %44, %cst_22 [0] : vector<8x64xf32> to vector<64xf32>
    %46 = vector.shape_cast %45 : vector<64xf32> to vector<1x64xf32>
    %cst_23 = arith.constant 1.250000e-01 : f32
    %47 = vector.broadcast %cst_23 : f32 to vector<1x64xf32>
    %48 = arith.mulf %46, %47 : vector<1x64xf32>
    %cst_24 = arith.constant 9.99999974E-6 : f32
    %49 = vector.broadcast %cst_24 : f32 to vector<1x64xf32>
    %50 = arith.addf %48, %49 : vector<1x64xf32>
    %51 = math.rsqrt %50 : vector<1x64xf32>
    %52 = vector.broadcast %51 : vector<1x64xf32> to vector<8x64xf32>
    %53 = arith.mulf %43, %52 : vector<8x64xf32>
    %cst_25 = arith.constant 0.00999999977 : f32
    %54 = vector.broadcast %cst_25 : f32 to vector<8x64xf32>
    %55 = arith.mulf %54, %53 : vector<8x64xf32>
    %56 = arith.maximumf %53, %55 : vector<8x64xf32>
    %57 = vector.shape_cast %56 : vector<8x64xf32> to vector<2x4x64xf32>
    %c0_26 = arith.constant 0 : index
    %c0_27 = arith.constant 0 : index
    %c0_28 = arith.constant 0 : index
    %58 = vector.load %arg6[%c0_26, %c0_27, %c0_28] : memref<2x4x4xbf16, #tpu.memory_space<vmem>>, vector<2x4x4xbf16>
    %59 = arith.truncf %57 : vector<2x4x64xf32> to vector<2x4x64xbf16>
    "tpu.trace_start"() <{level = 10 : i32, message = "bpl,blc->bpc"}> : () -> ()
    %cst_29 = arith.constant dense<0.000000e+00> : vector<2x4x64xf32>
    %60 = tpu.matmul %58, %59, %cst_29 {dimension_numbers = #tpu.dot_dimension_numbers<[2], [1], [1], [2], [0, 0, 0, 1, 1, 2], [0], [0]>} : vector<2x4x4xbf16>, vector<2x4x64xbf16>, vector<2x4x64xf32> -> vector<2x4x64xf32>
    "tpu.trace_stop"() : () -> ()
    %c0_30 = arith.constant 0 : index
    %c0_31 = arith.constant 0 : index
    %c0_32 = arith.constant 0 : index
    %61 = vector.load %arg7[%c0_30, %c0_31, %c0_32] : memref<2x4x64xf32, #tpu.memory_space<vmem>>, vector<2x4x64xf32>
    %62 = arith.mulf %60, %61 : vector<2x4x64xf32>
    %63 = vector.shape_cast %62 : vector<2x4x64xf32> to vector<2x4x16x4xf32>
    %cst_33 = arith.constant dense<0.000000e+00> : vector<2x4x16xf32>
    %64 = vector.multi_reduction <add>, %63, %cst_33 [3] : vector<2x4x16x4xf32> to vector<2x4x16xf32>
    %65 = vector.extract_strided_slice %64 {offsets = [0, 0, 0], sizes = [2, 2, 16], strides = [1, 1, 1]} : vector<2x4x16xf32> to vector<2x2x16xf32>
    %66 = vector.extract_strided_slice %64 {offsets = [0, 2, 0], sizes = [2, 2, 16], strides = [1, 1, 1]} : vector<2x4x16xf32> to vector<2x2x16xf32>
    %67 = tpu.concatenate %65, %66 in 2 : vector<2x2x16xf32>, vector<2x2x16xf32> -> vector<2x2x32xf32>
    %68 = vector.shape_cast %67 : vector<2x2x32xf32> to vector<4x32xf32>
    %69 = arith.truncf %68 : vector<4x32xf32> to vector<4x32xbf16>
    %c0_34 = arith.constant 0 : index
    %c0_35 = arith.constant 0 : index
    %70 = vector.load %arg8[%c0_34, %c0_35] : memref<32x64xbf16, #tpu.memory_space<vmem>>, vector<32x64xbf16>
    %cst_36 = arith.constant dense<0.000000e+00> : vector<4x64xf32>
    %71 = tpu.matmul %69, %70, %cst_36 {dimension_numbers = #tpu.dot_dimension_numbers<[1], [0], [0], [1], [0, 0, 1, 1], [], []>} : vector<4x32xbf16>, vector<32x64xbf16>, vector<4x64xf32> -> vector<4x64xf32>
    %cst_37 = arith.constant dense<0.000000e+00> : vector<64xf32>
    %72 = vector.multi_reduction <add>, %71, %cst_37 [0] : vector<4x64xf32> to vector<64xf32>
    %73 = vector.shape_cast %72 : vector<64xf32> to vector<1x64xf32>
    %cst_38 = arith.constant 2.500000e-01 : f32
    %74 = vector.broadcast %cst_38 : f32 to vector<1x64xf32>
    %75 = arith.mulf %73, %74 : vector<1x64xf32>
    %76 = vector.broadcast %75 : vector<1x64xf32> to vector<4x64xf32>
    %77 = arith.subf %71, %76 : vector<4x64xf32>
    %78 = arith.mulf %77, %77 : vector<4x64xf32>
    %cst_39 = arith.constant dense<0.000000e+00> : vector<64xf32>
    %79 = vector.multi_reduction <add>, %78, %cst_39 [0] : vector<4x64xf32> to vector<64xf32>
    %80 = vector.shape_cast %79 : vector<64xf32> to vector<1x64xf32>
    %cst_40 = arith.constant 2.500000e-01 : f32
    %81 = vector.broadcast %cst_40 : f32 to vector<1x64xf32>
    %82 = arith.mulf %80, %81 : vector<1x64xf32>
    %cst_41 = arith.constant 9.99999974E-6 : f32
    %83 = vector.broadcast %cst_41 : f32 to vector<1x64xf32>
    %84 = arith.addf %82, %83 : vector<1x64xf32>
    %85 = math.rsqrt %84 : vector<1x64xf32>
    %86 = vector.broadcast %85 : vector<1x64xf32> to vector<4x64xf32>
    %87 = arith.mulf %77, %86 : vector<4x64xf32>
    %cst_42 = arith.constant 0.00999999977 : f32
    %88 = vector.broadcast %cst_42 : f32 to vector<4x64xf32>
    %89 = arith.mulf %88, %87 : vector<4x64xf32>
    %90 = arith.maximumf %87, %89 : vector<4x64xf32>
    %91 = vector.shape_cast %90 : vector<4x64xf32> to vector<2x2x64xf32>
    %c0_43 = arith.constant 0 : index
    %c0_44 = arith.constant 0 : index
    %c0_45 = arith.constant 0 : index
    %92 = vector.load %arg9[%c0_43, %c0_44, %c0_45] : memref<2x2x2xbf16, #tpu.memory_space<vmem>>, vector<2x2x2xbf16>
    %93 = arith.truncf %91 : vector<2x2x64xf32> to vector<2x2x64xbf16>
    "tpu.trace_start"() <{level = 10 : i32, message = "bpl,blc->bpc"}> : () -> ()
    %cst_46 = arith.constant dense<0.000000e+00> : vector<2x2x64xf32>
    %94 = tpu.matmul %92, %93, %cst_46 {dimension_numbers = #tpu.dot_dimension_numbers<[2], [1], [1], [2], [0, 0, 0, 1, 1, 2], [0], [0]>} : vector<2x2x2xbf16>, vector<2x2x64xbf16>, vector<2x2x64xf32> -> vector<2x2x64xf32>
    "tpu.trace_stop"() : () -> ()
    %c0_47 = arith.constant 0 : index
    %c0_48 = arith.constant 0 : index
    %c0_49 = arith.constant 0 : index
    %95 = vector.load %arg10[%c0_47, %c0_48, %c0_49] : memref<2x2x64xf32, #tpu.memory_space<vmem>>, vector<2x2x64xf32>
    %96 = arith.mulf %94, %95 : vector<2x2x64xf32>
    %97 = vector.shape_cast %96 : vector<2x2x64xf32> to vector<2x2x16x4xf32>
    %cst_50 = arith.constant dense<0.000000e+00> : vector<2x2x16xf32>
    %98 = vector.multi_reduction <add>, %97, %cst_50 [3] : vector<2x2x16x4xf32> to vector<2x2x16xf32>
    %99 = vector.extract_strided_slice %98 {offsets = [0, 0, 0], sizes = [2, 1, 16], strides = [1, 1, 1]} : vector<2x2x16xf32> to vector<2x1x16xf32>
    %100 = vector.extract_strided_slice %98 {offsets = [0, 1, 0], sizes = [2, 1, 16], strides = [1, 1, 1]} : vector<2x2x16xf32> to vector<2x1x16xf32>
    %101 = tpu.concatenate %99, %100 in 2 : vector<2x1x16xf32>, vector<2x1x16xf32> -> vector<2x1x32xf32>
    %102 = vector.shape_cast %101 : vector<2x1x32xf32> to vector<2x32xf32>
    %103 = arith.truncf %102 : vector<2x32xf32> to vector<2x32xbf16>
    %c0_51 = arith.constant 0 : index
    %c0_52 = arith.constant 0 : index
    %104 = vector.load %arg11[%c0_51, %c0_52] : memref<32x128xbf16, #tpu.memory_space<vmem>>, vector<32x128xbf16>
    %cst_53 = arith.constant dense<0.000000e+00> : vector<2x128xf32>
    %105 = tpu.matmul %103, %104, %cst_53 {dimension_numbers = #tpu.dot_dimension_numbers<[1], [0], [0], [1], [0, 0, 1, 1], [], []>} : vector<2x32xbf16>, vector<32x128xbf16>, vector<2x128xf32> -> vector<2x128xf32>
    %c0_54 = arith.constant 0 : index
    %c0_55 = arith.constant 0 : index
    %106 = vector.load %arg12[%c0_54, %c0_55] : memref<1x128xf32, #tpu.memory_space<vmem>>, vector<1x128xf32>
    %107 = vector.broadcast %106 : vector<1x128xf32> to vector<2x128xf32>
    %108 = arith.addf %105, %107 : vector<2x128xf32>
    %c0_56 = arith.constant 0 : index
    %c0_57 = arith.constant 0 : index
    %109 = vector.load %arg13[%c0_56, %c0_57] : memref<2x128xf32, #tpu.memory_space<vmem>>, vector<2x128xf32>
    tpu.vector_store %arg13[%c0_56, %c0_57], %108 {strides = array<i32>} : memref<2x128xf32, #tpu.memory_space<vmem>>, vector<2x128xf32>,
    return
  }
  func.func @transform_0(%arg0: i32) -> (i32, i32) {
    %c0_i32 = arith.constant 0 : i32
    %c0_i32_0 = arith.constant 0 : i32
    %c0_i32_1 = arith.constant 0 : i32
    return %c0_i32, %c0_i32_0 : i32, i32
  }
  func.func @transform_1(%arg0: i32) -> (i32, i32) {
    %c0_i32 = arith.constant 0 : i32
    %c0_i32_0 = arith.constant 0 : i32
    %c0_i32_1 = arith.constant 0 : i32
    return %c0_i32, %c0_i32_0 : i32, i32
  }
  func.func @transform_2(%arg0: i32) -> (i32, i32, i32) {
    %c0_i32 = arith.constant 0 : i32
    %c0_i32_0 = arith.constant 0 : i32
    %c0_i32_1 = arith.constant 0 : i32
    %c0_i32_2 = arith.constant 0 : i32
    return %c0_i32, %c0_i32_0, %c0_i32_1 : i32, i32, i32
  }
  func.func @transform_3(%arg0: i32) -> (i32, i32, i32) {
    %c0_i32 = arith.constant 0 : i32
    %c0_i32_0 = arith.constant 0 : i32
    %c0_i32_1 = arith.constant 0 : i32
    %c0_i32_2 = arith.constant 0 : i32
    return %c0_i32, %c0_i32_0, %c0_i32_1 : i32, i32, i32
  }
  func.func @transform_4(%arg0: i32) -> (i32, i32) {
    %c0_i32 = arith.constant 0 : i32
    %c0_i32_0 = arith.constant 0 : i32
    %c0_i32_1 = arith.constant 0 : i32
    return %c0_i32, %c0_i32_0 : i32, i32
  }
  func.func @transform_5(%arg0: i32) -> (i32, i32, i32) {
    %c0_i32 = arith.constant 0 : i32
    %c0_i32_0 = arith.constant 0 : i32
    %c0_i32_1 = arith.constant 0 : i32
    %c0_i32_2 = arith.constant 0 : i32
    return %c0_i32, %c0_i32_0, %c0_i32_1 : i32, i32, i32
  }
  func.func @transform_6(%arg0: i32) -> (i32, i32, i32) {
    %c0_i32 = arith.constant 0 : i32
    %c0_i32_0 = arith.constant 0 : i32
    %c0_i32_1 = arith.constant 0 : i32
    %c0_i32_2 = arith.constant 0 : i32
    return %c0_i32, %c0_i32_0, %c0_i32_1 : i32, i32, i32
  }
  func.func @transform_7(%arg0: i32) -> (i32, i32) {
    %c0_i32 = arith.constant 0 : i32
    %c0_i32_0 = arith.constant 0 : i32
    %c0_i32_1 = arith.constant 0 : i32
    return %c0_i32, %c0_i32_0 : i32, i32
  }
  func.func @transform_8(%arg0: i32) -> (i32, i32, i32) {
    %c0_i32 = arith.constant 0 : i32
    %c0_i32_0 = arith.constant 0 : i32
    %c0_i32_1 = arith.constant 0 : i32
    %c0_i32_2 = arith.constant 0 : i32
    return %c0_i32, %c0_i32_0, %c0_i32_1 : i32, i32, i32
  }
  func.func @transform_9(%arg0: i32) -> (i32, i32, i32) {
    %c0_i32 = arith.constant 0 : i32
    %c0_i32_0 = arith.constant 0 : i32
    %c0_i32_1 = arith.constant 0 : i32
    %c0_i32_2 = arith.constant 0 : i32
    return %c0_i32, %c0_i32_0, %c0_i32_1 : i32, i32, i32
  }
  func.func @transform_10(%arg0: i32) -> (i32, i32) {
    %c0_i32 = arith.constant 0 : i32
    %c0_i32_0 = arith.constant 0 : i32
    %c0_i32_1 = arith.constant 0 : i32
    return %c0_i32, %c0_i32_0 : i32, i32
  }
  func.func @transform_11(%arg0: i32) -> (i32, i32) {
    %c0_i32 = arith.constant 0 : i32
    %c0_i32_0 = arith.constant 0 : i32
    %c0_i32_1 = arith.constant 0 : i32
    return %c0_i32, %c0_i32_0 : i32, i32
  }
  func.func @transform_12(%arg0: i32) -> (i32, i32) {
    %c0_i32 = arith.constant 0 : i32
    %c0_i32_0 = arith.constant 0 : i32
    %c0_i32_1 = arith.constant 0 : i32
    return %c0_i32, %c0_i32_0 : i32, i32
  }
}

</mosaic_0001>

<llo_original>
// kernel: _lambda_.1
$region0: #{_lambda_.1}
  #allocation0 [shape = 'u32[]', space=smem, size = 0x4, offset = 0x4, fixed_abs, tag = 'smem constant byte address 0x4 - core index']
  #allocation1 [shape = 'u32[144,128]{1,0:T(1,128)}', space=vmem, size = 0x12000, scoped, tag = 'internal scratch']
  %s0 = inlined_call_operand.vmem [shape: f32[16,4], index: 0, kind: input, shape index: {}]
  %s1 = inlined_call_operand.vmem [shape: bf16[4,32], index: 1, kind: input, shape index: {}]
  %s2 = inlined_call_operand.vmem [shape: bf16[2,8,8], index: 2, kind: input, shape index: {}]
  %s3 = inlined_call_operand.vmem [shape: f32[2,8,32], index: 3, kind: input, shape index: {}]
  %s4 = inlined_call_operand.vmem [shape: bf16[16,64], index: 4, kind: input, shape index: {}]
  %s5 = inlined_call_operand.vmem [shape: bf16[2,4,4], index: 5, kind: input, shape index: {}]
  %s6 = inlined_call_operand.vmem [shape: f32[2,4,64], index: 6, kind: input, shape index: {}]
  %s7 = inlined_call_operand.vmem [shape: bf16[32,64], index: 7, kind: input, shape index: {}]
  %s8 = inlined_call_operand.vmem [shape: bf16[2,2,2], index: 8, kind: input, shape index: {}]
  %s9 = inlined_call_operand.vmem [shape: f32[2,2,64], index: 9, kind: input, shape index: {}]
  %s10 = inlined_call_operand.vmem [shape: bf16[32,128], index: 10, kind: input, shape index: {}]
  %s11 = inlined_call_operand.vmem [shape: f32[1,128], index: 11, kind: input, shape index: {}]
  %s12 = inlined_call_operand.hbm [shape: f32[2,128], index: 12, kind: output, shape index: {}]
  %s13 = sld [smem:[#allocation0]]
  $region58: #{_lambda_.1} parent=0
    _
  %s15 = ssub.s32 1, %s13
  %s16 = scalar_select 0, %s15, %s13
  $region1: #{_lambda_.1} parent=0
    #allocation2 [shape = 'u8[1024]{0}', space=vmem, size = 0x400, scoped, tag = 'output window, operand 0, single buffered']
    #allocation3 [shape = 's32[1]{0}', space=sflag, size = 0x4, scoped, tag = 'scoped memory for _lambda_.1']
    %17 = vsyncpa [#allocation3], 0
    // Predicated region
    $region2: #{_lambda_.1} parent=1 // pred_check
      _
    $region3: #{_lambda_.1} parent=1 // pred_check_branch
      %19 = sbr.rel (0) target = $region5
    $region4: #{_lambda_.1} parent=1 // pred_region
      _
    $region5: #{_lambda_.1} parent=1 // pred_fallthru
      _
    // Predicated region
    $region6: #{_lambda_.1} parent=1 // pred_check
      _
    $region7: #{_lambda_.1} parent=1 // pred_check_branch
      %21 = sbr.rel (0) target = $region9
    $region8: #{_lambda_.1} parent=1 // pred_region
      _
    $region9: #{_lambda_.1} parent=1 // pred_fallthru
      _
    // Predicated region
    $region10: #{_lambda_.1} parent=1 // pred_check
      _
    $region11: #{_lambda_.1} parent=1 // pred_check_branch
      %23 = sbr.rel (0) target = $region13
    $region12: #{_lambda_.1} parent=1 // pred_region
      _
    $region13: #{_lambda_.1} parent=1 // pred_fallthru
      _
    // Predicated region
    $region14: #{_lambda_.1} parent=1 // pred_check
      _
    $region15: #{_lambda_.1} parent=1 // pred_check_branch
      %25 = sbr.rel (0) target = $region17
    $region16: #{_lambda_.1} parent=1 // pred_region
      _
    $region17: #{_lambda_.1} parent=1 // pred_fallthru
      _
    // Predicated region
    $region18: #{_lambda_.1} parent=1 // pred_check
      _
    $region19: #{_lambda_.1} parent=1 // pred_check_branch
      %27 = sbr.rel (0) target = $region21
    $region20: #{_lambda_.1} parent=1 // pred_region
      _
    $region21: #{_lambda_.1} parent=1 // pred_fallthru
      _
    // Predicated region
    $region22: #{_lambda_.1} parent=1 // pred_check
      _
    $region23: #{_lambda_.1} parent=1 // pred_check_branch
      %29 = sbr.rel (0) target = $region25
    $region24: #{_lambda_.1} parent=1 // pred_region
      _
    $region25: #{_lambda_.1} parent=1 // pred_fallthru
      _
    // Predicated region
    $region26: #{_lambda_.1} parent=1 // pred_check
      _
    $region27: #{_lambda_.1} parent=1 // pred_check_branch
      %31 = sbr.rel (0) target = $region29
    $region28: #{_lambda_.1} parent=1 // pred_region
      _
    $region29: #{_lambda_.1} parent=1 // pred_fallthru
      _
    // Predicated region
    $region30: #{_lambda_.1} parent=1 // pred_check
      _
    $region31: #{_lambda_.1} parent=1 // pred_check_branch
      %33 = sbr.rel (0) target = $region33
    $region32: #{_lambda_.1} parent=1 // pred_region
      _
    $region33: #{_lambda_.1} parent=1 // pred_fallthru
      _
    // Predicated region
    $region34: #{_lambda_.1} parent=1 // pred_check
      _
    $region35: #{_lambda_.1} parent=1 // pred_check_branch
      %35 = sbr.rel (0) target = $region37
    $region36: #{_lambda_.1} parent=1 // pred_region
      _
    $region37: #{_lambda_.1} parent=1 // pred_fallthru
      _
    // Predicated region
    $region38: #{_lambda_.1} parent=1 // pred_check
      _
    $region39: #{_lambda_.1} parent=1 // pred_check_branch
      %37 = sbr.rel (0) target = $region41
    $region40: #{_lambda_.1} parent=1 // pred_region
      _
    $region41: #{_lambda_.1} parent=1 // pred_fallthru
      _
    // Predicated region
    $region42: #{_lambda_.1} parent=1 // pred_check
      _
    $region43: #{_lambda_.1} parent=1 // pred_check_branch
      %39 = sbr.rel (0) target = $region45
    $region44: #{_lambda_.1} parent=1 // pred_region
      _
    $region45: #{_lambda_.1} parent=1 // pred_fallthru
      _
    // Predicated region
    $region46: #{_lambda_.1} parent=1 // pred_check
      _
    $region47: #{_lambda_.1} parent=1 // pred_check_branch
      %41 = sbr.rel (0) target = $region49
    $region48: #{_lambda_.1} parent=1 // pred_region
      _
    $region49: #{_lambda_.1} parent=1 // pred_fallthru
      _
    %v43 = vld [vmem:[%s0] sm:$0xff]
    %v44 = vld [vmem:[%s0 + $0x8] sm:$0xff]
    %v45 = vpack.c.bf16 %v44, %v43
    %v46 = vld [vmem:[%s1] sm:$0x3]
    %vm47 = vcmask 31744
    %v49 = vsel %vm47, %v45, 0
    %vm51 = vcmask 1041408
    %v53 = vsel %vm51, %v46, 0
    %55 = vmatprep.subr.bf16.mxu0 0
    %56 = vmatpush1.bf16.msra.mxu0 %v53
    %57 = vmatprep.subr.bf16.mxu0 0
    %58 = vmatpush1.bf16.msra.mxu0 0
    %59 = vmatprep.subr.bf16.mxu0 0
    %60 = vmatpush1.bf16.msra.mxu0 0
    %61 = vmatprep.subr.bf16.mxu0 0
    %62 = vmatpush1.bf16.msra.mxu0 0
    %63 = vmatprep.subr.bf16.mxu0 0
    %64 = vmatpush1.bf16.msra.mxu0 0
    %65 = vmatprep.subr.bf16.mxu0 0
    %66 = vmatpush1.bf16.msra.mxu0 0
    %67 = vmatprep.subr.bf16.mxu0 0
    %68 = vmatpush1.bf16.msra.mxu0 0
    %69 = vmatprep.subr.bf16.mxu0 0
    %70 = vmatpush1.bf16.msra.mxu0 0
    %71 = vmatprep.subr.bf16.mxu0 0
    %72 = vmatpush1.bf16.msra.mxu0 0
    %73 = vmatprep.subr.bf16.mxu0 0
    %74 = vmatpush1.bf16.msra.mxu0 0
    %75 = vmatprep.subr.bf16.mxu0 0
    %76 = vmatpush1.bf16.msra.mxu0 0
    %77 = vmatprep.subr.bf16.mxu0 0
    %78 = vmatpush1.bf16.msra.mxu0 0
    %79 = vmatprep.subr.bf16.mxu0 0
    %80 = vmatpush1.bf16.msra.mxu0 0
    %81 = vmatprep.subr.bf16.mxu0 0
    %82 = vmatpush1.bf16.msra.mxu0 0
    %83 = vmatprep.subr.bf16.mxu0 0
    %84 = vmatpush1.bf16.msra.mxu0 0
    %85 = vmatprep.subr.bf16.mxu0 0
    %86 = vmatpush1.bf16.msra.mxu0 0
    %87 = vmatprep.mubr.bf16.mxu0 0
    %88 = vmatmul.mubr.bf16.gmra.mrb[0].mxu0 %v49
    %v89 = vpop.f32.mrb[0].mxu0
    %v90 = vadd.f32 0.0, %v89
    %v91 = vpop.f32.mrb[0].mxu0
    %v92 = vpop.f32.mrb[0].mxu0
    %v93 = vadd.f32 0.0, %v92
    %v94 = vpop.f32.mrb[0].mxu0
    %95 = vdwg.mxu0
    %vm96 = vcmask 261120
    %v97 = vsel %vm96, %v90, 0.0
    %v98 = vsel %vm96, %v93, 0.0
    %v99 = vadd.f32 %v97, %v98
    %v100 = vrot.slane %v99, 4
    %v101 = vadd.f32 %v99, %v100
    %v102 = vrot.slane %v101, 2
    %v103 = vadd.f32 %v101, %v102
    %v104 = vrot.slane %v103, 1
    %v105 = vadd.f32 %v103, %v104
    %v106 = vmul.f32 %v105, 0.0625
    %v107 = vsub.f32 %v90, %v106
    %v108 = vsub.f32 %v93, %v106
    %v109 = vmul.f32 %v107, %v107
    %v110 = vmul.f32 %v108, %v108
    %v111 = vsel %vm96, %v109, 0.0
    %v112 = vsel %vm96, %v110, 0.0
    %v113 = vadd.f32 %v111, %v112
    %v114 = vrot.slane %v113, 4
    %v115 = vadd.f32 %v113, %v114
    %v116 = vrot.slane %v115, 2
    %v117 = vadd.f32 %v115, %v116
    %v118 = vrot.slane %v117, 1
    %v119 = vadd.f32 %v117, %v118
    %v120 = vmul.f32 %v119, 0.0625
    %v121 = vadd.f32 %v120, 1e-05
    %v122 = vrsqrt.pop %v121
    %v123 = vmul.f32 %v107, %v122
    %v124 = vmul.f32 %v108, %v122
    %v125 = vmul.f32 %v123, 0.01
    %v126 = vmul.f32 %v124, 0.01
    %v127 = vmax.f32 %v123, %v125
    %v128 = vmax.f32 %v124, %v126
    %v129 = vld [vmem:[%s2] sm:$0xf]
    %v130 = vld [vmem:[%s2 + $0x4] sm:$0xf]
    %v131 = vpack.c.bf16 %v127, %v127
    %v132 = vpack.c.bf16 %v128, %v128
    %vm133 = vcmask 64512
    %v135 = vsel %vm133, %v129, 0
    %vm137 = vcmask 1043456
    %v139 = vsel %vm137, %v131, 0
    %141 = vmatprep.subr.bf16.mxu0 0
    %142 = vmatpush1.bf16.msra.mxu0 %v139
    %143 = vmatprep.subr.bf16.mxu0 0
    %144 = vmatpush1.bf16.msra.mxu0 0
    %145 = vmatprep.subr.bf16.mxu0 0
    %146 = vmatpush1.bf16.msra.mxu0 0
    %147 = vmatprep.subr.bf16.mxu0 0
    %148 = vmatpush1.bf16.msra.mxu0 0
    %149 = vmatprep.subr.bf16.mxu0 0
    %150 = vmatpush1.bf16.msra.mxu0 0
    %151 = vmatprep.subr.bf16.mxu0 0
    %152 = vmatpush1.bf16.msra.mxu0 0
    %153 = vmatprep.subr.bf16.mxu0 0
    %154 = vmatpush1.bf16.msra.mxu0 0
    %155 = vmatprep.subr.bf16.mxu0 0
    %156 = vmatpush1.bf16.msra.mxu0 0
    %157 = vmatprep.subr.bf16.mxu0 0
    %158 = vmatpush1.bf16.msra.mxu0 0
    %159 = vmatprep.subr.bf16.mxu0 0
    %160 = vmatpush1.bf16.msra.mxu0 0
    %161 = vmatprep.subr.bf16.mxu0 0
    %162 = vmatpush1.bf16.msra.mxu0 0
    %163 = vmatprep.subr.bf16.mxu0 0
    %164 = vmatpush1.bf16.msra.mxu0 0
    %165 = vmatprep.subr.bf16.mxu0 0
    %166 = vmatpush1.bf16.msra.mxu0 0
    %167 = vmatprep.subr.bf16.mxu0 0
    %168 = vmatpush1.bf16.msra.mxu0 0
    %169 = vmatprep.subr.bf16.mxu0 0
    %170 = vmatpush1.bf16.msra.mxu0 0
    %171 = vmatprep.subr.bf16.mxu0 0
    %172 = vmatpush1.bf16.msra.mxu0 0
    %173 = vmatprep.mubr.bf16.mxu0 0
    %174 = vmatmul.mubr.bf16.gmra.mrb[0].mxu0 %v135
    %v175 = vpop.f32.mrb[0].mxu0
    %v176 = vadd.f32 0.0, %v175
    %v177 = vpop.f32.mrb[0].mxu0
    %v178 = vpop.f32.mrb[0].mxu0
    %v179 = vpop.f32.mrb[0].mxu0
    %180 = vdwg.mxu0
    %v182 = vsel %vm133, %v130, 0
    %v185 = vsel %vm137, %v132, 0
    %187 = vmatprep.subr.bf16.mxu0 0
    %188 = vmatpush1.bf16.msra.mxu0 %v185
    %189 = vmatprep.subr.bf16.mxu0 0
    %190 = vmatpush1.bf16.msra.mxu0 0
    %191 = vmatprep.subr.bf16.mxu0 0
    %192 = vmatpush1.bf16.msra.mxu0 0
    %193 = vmatprep.subr.bf16.mxu0 0
    %194 = vmatpush1.bf16.msra.mxu0 0
    %195 = vmatprep.subr.bf16.mxu0 0
    %196 = vmatpush1.bf16.msra.mxu0 0
    %197 = vmatprep.subr.bf16.mxu0 0
    %198 = vmatpush1.bf16.msra.mxu0 0
    %199 = vmatprep.subr.bf16.mxu0 0
    %200 = vmatpush1.bf16.msra.mxu0 0
    %201 = vmatprep.subr.bf16.mxu0 0
    %202 = vmatpush1.bf16.msra.mxu0 0
    %203 = vmatprep.subr.bf16.mxu0 0
    %204 = vmatpush1.bf16.msra.mxu0 0
    %205 = vmatprep.subr.bf16.mxu0 0
    %206 = vmatpush1.bf16.msra.mxu0 0
    %207 = vmatprep.subr.bf16.mxu0 0
    %208 = vmatpush1.bf16.msra.mxu0 0
    %209 = vmatprep.subr.bf16.mxu0 0
    %210 = vmatpush1.bf16.msra.mxu0 0
    %211 = vmatprep.subr.bf16.mxu0 0
    %212 = vmatpush1.bf16.msra.mxu0 0
    %213 = vmatprep.subr.bf16.mxu0 0
    %214 = vmatpush1.bf16.msra.mxu0 0
    %215 = vmatprep.subr.bf16.mxu0 0
    %216 = vmatpush1.bf16.msra.mxu0 0
    %217 = vmatprep.subr.bf16.mxu0 0
    %218 = vmatpush1.bf16.msra.mxu0 0
    %219 = vmatprep.mubr.bf16.mxu0 0
    %220 = vmatmul.mubr.bf16.gmra.mrb[0].mxu0 %v182
    %v221 = vpop.f32.mrb[0].mxu0
    %v222 = vadd.f32 0.0, %v221
    %v223 = vpop.f32.mrb[0].mxu0
    %v224 = vpop.f32.mrb[0].mxu0
    %v225 = vpop.f32.mrb[0].mxu0
    %226 = vdwg.mxu0
    %v227 = vld [vmem:[%s3] sm:$0xff]
    %v228 = vld [vmem:[%s3 + $0x8] sm:$0xff]
    %v229 = vmul.f32 %v176, %v227
    %v230 = vmul.f32 %v222, %v228
    %233 = vrot.lane.b32.xlu0 %v229, 124
    %v234 = vpop.permute.xlu0 %233
    %235 = vrot.lane.b32.xlu0 %v230, 124
    %v236 = vpop.permute.xlu0 %235
    %239 = vrot.lane.b32.xlu0 %v229, 120
    %v240 = vpop.permute.xlu0 %239
    %241 = vrot.lane.b32.xlu0 %v230, 120
    %v242 = vpop.permute.xlu0 %241
    %245 = vrot.lane.b32.xlu0 %v229, 116
    %v246 = vpop.permute.xlu0 %245
    %247 = vrot.lane.b32.xlu0 %v230, 116
    %v248 = vpop.permute.xlu0 %247
    %251 = vrot.lane.b32.xlu0 %v229, 112
    %v252 = vpop.permute.xlu0 %251
    %253 = vrot.lane.b32.xlu0 %v230, 112
    %v254 = vpop.permute.xlu0 %253
    %257 = vrot.lane.b32.xlu0 %v229, 108
    %v258 = vpop.permute.xlu0 %257
    %259 = vrot.lane.b32.xlu0 %v230, 108
    %v260 = vpop.permute.xlu0 %259
    %263 = vrot.lane.b32.xlu0 %v229, 104
    %v264 = vpop.permute.xlu0 %263
    %265 = vrot.lane.b32.xlu0 %v230, 104
    %v266 = vpop.permute.xlu0 %265
    %269 = vrot.lane.b32.xlu0 %v229, 100
    %v270 = vpop.permute.xlu0 %269
    %271 = vrot.lane.b32.xlu0 %v230, 100
    %v272 = vpop.permute.xlu0 %271
    %v275 = vcombine.low %v229, %v240
    %v276 = vcombine.high %v229, %v240
    %v278 = vunpack.c.l.s4 1983009808
    %v279 = vunpack.c.0.s8 %v278
    %v280 = vlaneseq
    %v281 = vshrl.u32 %v280, 7
    %v282 = vsub.s32 %v279, %v281
    %v283 = vrot.slane %v275, %v282
    %v285 = vunpack.c.l.s4 1983009808
    %v286 = vunpack.c.0.s8 %v285
    %v287 = vlaneseq
    %v288 = vshrl.u32 %v287, 7
    %v289 = vsub.s32 %v286, %v288
    %v290 = vrot.slane %v276, %v289
    %v291 = vcombine.low %v234, %v246
    %v292 = vcombine.high %v234, %v246
    %v294 = vunpack.c.l.s4 1983009808
    %v295 = vunpack.c.0.s8 %v294
    %v296 = vlaneseq
    %v297 = vshrl.u32 %v296, 7
    %v298 = vsub.s32 %v295, %v297
    %v299 = vrot.slane %v291, %v298
    %v301 = vunpack.c.l.s4 1983009808
    %v302 = vunpack.c.0.s8 %v301
    %v303 = vlaneseq
    %v304 = vshrl.u32 %v303, 7
    %v305 = vsub.s32 %v302, %v304
    %v306 = vrot.slane %v292, %v305
    %v307 = vcombine.low %v252, %v264
    %v308 = vcombine.high %v252, %v264
    %v310 = vunpack.c.l.s4 1983009808
    %v311 = vunpack.c.0.s8 %v310
    %v312 = vlaneseq
    %v313 = vshrl.u32 %v312, 7
    %v314 = vsub.s32 %v311, %v313
    %v315 = vrot.slane %v307, %v314
    %v317 = vunpack.c.l.s4 1983009808
    %v318 = vunpack.c.0.s8 %v317
    %v319 = vlaneseq
    %v320 = vshrl.u32 %v319, 7
    %v321 = vsub.s32 %v318, %v320
    %v322 = vrot.slane %v308, %v321
    %v323 = vcombine.low %v258, %v270
    %v324 = vcombine.high %v258, %v270
    %v326 = vunpack.c.l.s4 1983009808
    %v327 = vunpack.c.0.s8 %v326
    %v328 = vlaneseq
    %v329 = vshrl.u32 %v328, 7
    %v330 = vsub.s32 %v327, %v329
    %v331 = vrot.slane %v323, %v330
    %v333 = vunpack.c.l.s4 1983009808
    %v334 = vunpack.c.0.s8 %v333
    %v335 = vlaneseq
    %v336 = vshrl.u32 %v335, 7
    %v337 = vsub.s32 %v334, %v336
    %v338 = vrot.slane %v324, %v337
    %v339 = vcombine.low %v283, %v299
    %v340 = vcombine.high %v283, %v299
    %v342 = vunpack.c.l.s4 1934713408
    %v343 = vunpack.c.0.s8 %v342
    %v344 = vlaneseq
    %v345 = vshrl.u32 %v344, 7
    %v346 = vsub.s32 %v343, %v345
    %v347 = vrot.slane %v339, %v346
    %v349 = vunpack.c.l.s4 1934713408
    %v350 = vunpack.c.0.s8 %v349
    %v351 = vlaneseq
    %v352 = vshrl.u32 %v351, 7
    %v353 = vsub.s32 %v350, %v352
    %v354 = vrot.slane %v340, %v353
    %v355 = vcombine.low %v290, %v306
    %v356 = vcombine.high %v290, %v306
    %v358 = vunpack.c.l.s4 1934713408
    %v359 = vunpack.c.0.s8 %v358
    %v360 = vlaneseq
    %v361 = vshrl.u32 %v360, 7
    %v362 = vsub.s32 %v359, %v361
    %v363 = vrot.slane %v355, %v362
    %v365 = vunpack.c.l.s4 1934713408
    %v366 = vunpack.c.0.s8 %v365
    %v367 = vlaneseq
    %v368 = vshrl.u32 %v367, 7
    %v369 = vsub.s32 %v366, %v368
    %v370 = vrot.slane %v356, %v369
    %v371 = vcombine.low %v315, %v331
    %v372 = vcombine.high %v315, %v331
    %v374 = vunpack.c.l.s4 1934713408
    %v375 = vunpack.c.0.s8 %v374
    %v376 = vlaneseq
    %v377 = vshrl.u32 %v376, 7
    %v378 = vsub.s32 %v375, %v377
    %v379 = vrot.slane %v371, %v378
    %v381 = vunpack.c.l.s4 1934713408
    %v382 = vunpack.c.0.s8 %v381
    %v383 = vlaneseq
    %v384 = vshrl.u32 %v383, 7
    %v385 = vsub.s32 %v382, %v384
    %v386 = vrot.slane %v372, %v385
    %v387 = vcombine.low %v322, %v338
    %v388 = vcombine.high %v322, %v338
    %v390 = vunpack.c.l.s4 1934713408
    %v391 = vunpack.c.0.s8 %v390
    %v392 = vlaneseq
    %v393 = vshrl.u32 %v392, 7
    %v394 = vsub.s32 %v391, %v393
    %v395 = vrot.slane %v387, %v394
    %v397 = vunpack.c.l.s4 1934713408
    %v398 = vunpack.c.0.s8 %v397
    %v399 = vlaneseq
    %v400 = vshrl.u32 %v399, 7
    %v401 = vsub.s32 %v398, %v400
    %v402 = vrot.slane %v388, %v401
    %v403 = vcombine.low %v347, %v379
    %v404 = vcombine.high %v347, %v379
    %v405 = vcombine.low %v354, %v386
    %v406 = vcombine.high %v354, %v386
    %v407 = vcombine.low %v363, %v395
    %v408 = vcombine.high %v363, %v395
    %v409 = vcombine.low %v370, %v402
    %v410 = vcombine.high %v370, %v402
    %v411 = vcombine.low %v230, %v242
    %v412 = vcombine.high %v230, %v242
    %v414 = vunpack.c.l.s4 1983009808
    %v415 = vunpack.c.0.s8 %v414
    %v416 = vlaneseq
    %v417 = vshrl.u32 %v416, 7
    %v418 = vsub.s32 %v415, %v417
    %v419 = vrot.slane %v411, %v418
    %v421 = vunpack.c.l.s4 1983009808
    %v422 = vunpack.c.0.s8 %v421
    %v423 = vlaneseq
    %v424 = vshrl.u32 %v423, 7
    %v425 = vsub.s32 %v422, %v424
    %v426 = vrot.slane %v412, %v425
    %v427 = vcombine.low %v236, %v248
    %v428 = vcombine.high %v236, %v248
    %v430 = vunpack.c.l.s4 1983009808
    %v431 = vunpack.c.0.s8 %v430
    %v432 = vlaneseq
    %v433 = vshrl.u32 %v432, 7
    %v434 = vsub.s32 %v431, %v433
    %v435 = vrot.slane %v427, %v434
    %v437 = vunpack.c.l.s4 1983009808
    %v438 = vunpack.c.0.s8 %v437
    %v439 = vlaneseq
    %v440 = vshrl.u32 %v439, 7
    %v441 = vsub.s32 %v438, %v440
    %v442 = vrot.slane %v428, %v441
    %v443 = vcombine.low %v254, %v266
    %v444 = vcombine.high %v254, %v266
    %v446 = vunpack.c.l.s4 1983009808
    %v447 = vunpack.c.0.s8 %v446
    %v448 = vlaneseq
    %v449 = vshrl.u32 %v448, 7
    %v450 = vsub.s32 %v447, %v449
    %v451 = vrot.slane %v443, %v450
    %v453 = vunpack.c.l.s4 1983009808
    %v454 = vunpack.c.0.s8 %v453
    %v455 = vlaneseq
    %v456 = vshrl.u32 %v455, 7
    %v457 = vsub.s32 %v454, %v456
    %v458 = vrot.slane %v444, %v457
    %v459 = vcombine.low %v260, %v272
    %v460 = vcombine.high %v260, %v272
    %v462 = vunpack.c.l.s4 1983009808
    %v463 = vunpack.c.0.s8 %v462
    %v464 = vlaneseq
    %v465 = vshrl.u32 %v464, 7
    %v466 = vsub.s32 %v463, %v465
    %v467 = vrot.slane %v459, %v466
    %v469 = vunpack.c.l.s4 1983009808
    %v470 = vunpack.c.0.s8 %v469
    %v471 = vlaneseq
    %v472 = vshrl.u32 %v471, 7
    %v473 = vsub.s32 %v470, %v472
    %v474 = vrot.slane %v460, %v473
    %v475 = vcombine.low %v419, %v435
    %v476 = vcombine.high %v419, %v435
    %v478 = vunpack.c.l.s4 1934713408
    %v479 = vunpack.c.0.s8 %v478
    %v480 = vlaneseq
    %v481 = vshrl.u32 %v480, 7
    %v482 = vsub.s32 %v479, %v481
    %v483 = vrot.slane %v475, %v482
    %v485 = vunpack.c.l.s4 1934713408
    %v486 = vunpack.c.0.s8 %v485
    %v487 = vlaneseq
    %v488 = vshrl.u32 %v487, 7
    %v489 = vsub.s32 %v486, %v488
    %v490 = vrot.slane %v476, %v489
    %v491 = vcombine.low %v426, %v442
    %v492 = vcombine.high %v426, %v442
    %v494 = vunpack.c.l.s4 1934713408
    %v495 = vunpack.c.0.s8 %v494
    %v496 = vlaneseq
    %v497 = vshrl.u32 %v496, 7
    %v498 = vsub.s32 %v495, %v497
    %v499 = vrot.slane %v491, %v498
    %v501 = vunpack.c.l.s4 1934713408
    %v502 = vunpack.c.0.s8 %v501
    %v503 = vlaneseq
    %v504 = vshrl.u32 %v503, 7
    %v505 = vsub.s32 %v502, %v504
    %v506 = vrot.slane %v492, %v505
    %v507 = vcombine.low %v451, %v467
    %v508 = vcombine.high %v451, %v467
    %v510 = vunpack.c.l.s4 1934713408
    %v511 = vunpack.c.0.s8 %v510
    %v512 = vlaneseq
    %v513 = vshrl.u32 %v512, 7
    %v514 = vsub.s32 %v511, %v513
    %v515 = vrot.slane %v507, %v514
    %v517 = vunpack.c.l.s4 1934713408
    %v518 = vunpack.c.0.s8 %v517
    %v519 = vlaneseq
    %v520 = vshrl.u32 %v519, 7
    %v521 = vsub.s32 %v518, %v520
    %v522 = vrot.slane %v508, %v521
    %v523 = vcombine.low %v458, %v474
    %v524 = vcombine.high %v458, %v474
    %v526 = vunpack.c.l.s4 1934713408
    %v527 = vunpack.c.0.s8 %v526
    %v528 = vlaneseq
    %v529 = vshrl.u32 %v528, 7
    %v530 = vsub.s32 %v527, %v529
    %v531 = vrot.slane %v523, %v530
    %v533 = vunpack.c.l.s4 1934713408
    %v534 = vunpack.c.0.s8 %v533
    %v535 = vlaneseq
    %v536 = vshrl.u32 %v535, 7
    %v537 = vsub.s32 %v534, %v536
    %v538 = vrot.slane %v524, %v537
    %v539 = vcombine.low %v483, %v515
    %v540 = vcombine.high %v483, %v515
    %v541 = vcombine.low %v490, %v522
    %v542 = vcombine.high %v490, %v522
    %v543 = vcombine.low %v499, %v531
    %v544 = vcombine.high %v499, %v531
    %v545 = vcombine.low %v506, %v538
    %v546 = vcombine.high %v506, %v538
    %v547 = vsel %vm47, %v403, 0.0
    %548 = vadd.xlane.f32.xlu0 %v547
    %v549 = vpop.xlane.xlu0 %548
    %v550 = vsel %vm47, %v404, 0.0
    %551 = vadd.xlane.f32.xlu0 %v550
    %v552 = vpop.xlane.xlu0 %551
    %v553 = vsel %vm47, %v405, 0.0
    %554 = vadd.xlane.f32.xlu0 %v553
    %v555 = vpop.xlane.xlu0 %554
    %v556 = vsel %vm47, %v406, 0.0
    %557 = vadd.xlane.f32.xlu0 %v556
    %v558 = vpop.xlane.xlu0 %557
    %v559 = vsel %vm47, %v407, 0.0
    %560 = vadd.xlane.f32.xlu0 %v559
    %v561 = vpop.xlane.xlu0 %560
    %v562 = vsel %vm47, %v408, 0.0
    %563 = vadd.xlane.f32.xlu0 %v562
    %v564 = vpop.xlane.xlu0 %563
    %v565 = vsel %vm47, %v409, 0.0
    %566 = vadd.xlane.f32.xlu0 %v565
    %v567 = vpop.xlane.xlu0 %566
    %v568 = vsel %vm47, %v410, 0.0
    %569 = vadd.xlane.f32.xlu0 %v568
    %v570 = vpop.xlane.xlu0 %569
    %v571 = vsel %vm47, %v539, 0.0
    %572 = vadd.xlane.f32.xlu0 %v571
    %v573 = vpop.xlane.xlu0 %572
    %v574 = vsel %vm47, %v540, 0.0
    %575 = vadd.xlane.f32.xlu0 %v574
    %v576 = vpop.xlane.xlu0 %575
    %v577 = vsel %vm47, %v541, 0.0
    %578 = vadd.xlane.f32.xlu0 %v577
    %v579 = vpop.xlane.xlu0 %578
    %v580 = vsel %vm47, %v542, 0.0
    %581 = vadd.xlane.f32.xlu0 %v580
    %v582 = vpop.xlane.xlu0 %581
    %v583 = vsel %vm47, %v543, 0.0
    %584 = vadd.xlane.f32.xlu0 %v583
    %v585 = vpop.xlane.xlu0 %584
    %v586 = vsel %vm47, %v544, 0.0
    %587 = vadd.xlane.f32.xlu0 %v586
    %v588 = vpop.xlane.xlu0 %587
    %v589 = vsel %vm47, %v545, 0.0
    %590 = vadd.xlane.f32.xlu0 %v589
    %v591 = vpop.xlane.xlu0 %590
    %v592 = vsel %vm47, %v546, 0.0
    %593 = vadd.xlane.f32.xlu0 %v592
    %v594 = vpop.xlane.xlu0 %593
    %v603 = vlaneseq
    %v604 = vand.u32 %v603, 127
    %v605 = vlaneseq
    %v606 = vshrl.u32 %v605, 7
    %v607 = vsub.s32 %v604, %v606
    %v608 = vrot.slane %v549, %v607
    %v609 = vlaneseq
    %v610 = vshrl.u32 %v609, 7
    %v611 = vsub.s32 %v604, %v610
    %v612 = vrot.slane %v552, %v611
    %v613 = vlaneseq
    %v614 = vshrl.u32 %v613, 7
    %v615 = vsub.s32 %v604, %v614
    %v616 = vrot.slane %v555, %v615
    %v617 = vlaneseq
    %v618 = vshrl.u32 %v617, 7
    %v619 = vsub.s32 %v604, %v618
    %v620 = vrot.slane %v558, %v619
    %v621 = vlaneseq
    %v622 = vshrl.u32 %v621, 7
    %v623 = vsub.s32 %v604, %v622
    %v624 = vrot.slane %v573, %v623
    %v625 = vlaneseq
    %v626 = vshrl.u32 %v625, 7
    %v627 = vsub.s32 %v604, %v626
    %v628 = vrot.slane %v576, %v627
    %v629 = vlaneseq
    %v630 = vshrl.u32 %v629, 7
    %v631 = vsub.s32 %v604, %v630
    %v632 = vrot.slane %v579, %v631
    %v633 = vlaneseq
    %v634 = vshrl.u32 %v633, 7
    %v635 = vsub.s32 %v604, %v634
    %v636 = vrot.slane %v582, %v635
    %vm637 = vcmask 1041409
    %v638 = vsel %vm637, %v612, %v608
    %vm639 = vcmask 1042434
    %v640 = vsel %vm639, %v616, %v638
    %vm641 = vcmask 1043459
    %v642 = vsel %vm641, %v620, %v640
    %v643 = vsel %vm637, %v628, %v624
    %v644 = vsel %vm639, %v632, %v643
    %v645 = vsel %vm641, %v636, %v644
    %v656 = vadd.s32 %v604, 4294967288
    %v657 = vlaneseq
    %v658 = vshrl.u32 %v657, 7
    %v659 = vsub.s32 %v656, %v658
    %v660 = vrot.slane %v561, %v659
    %v661 = vlaneseq
    %v662 = vshrl.u32 %v661, 7
    %v663 = vsub.s32 %v656, %v662
    %v664 = vrot.slane %v564, %v663
    %v665 = vlaneseq
    %v666 = vshrl.u32 %v665, 7
    %v667 = vsub.s32 %v656, %v666
    %v668 = vrot.slane %v567, %v667
    %v669 = vlaneseq
    %v670 = vshrl.u32 %v669, 7
    %v671 = vsub.s32 %v656, %v670
    %v672 = vrot.slane %v570, %v671
    %v673 = vlaneseq
    %v674 = vshrl.u32 %v673, 7
    %v675 = vsub.s32 %v656, %v674
    %v676 = vrot.slane %v585, %v675
    %v677 = vlaneseq
    %v678 = vshrl.u32 %v677, 7
    %v679 = vsub.s32 %v656, %v678
    %v680 = vrot.slane %v588, %v679
    %v681 = vlaneseq
    %v682 = vshrl.u32 %v681, 7
    %v683 = vsub.s32 %v656, %v682
    %v684 = vrot.slane %v591, %v683
    %v685 = vlaneseq
    %v686 = vshrl.u32 %v685, 7
    %v687 = vsub.s32 %v656, %v686
    %v688 = vrot.slane %v594, %v687
    %v689 = vsel %vm637, %v664, %v660
    %v690 = vsel %vm639, %v668, %v689
    %v691 = vsel %vm641, %v672, %v690
    %v692 = vsel %vm637, %v680, %v676
    %v693 = vsel %vm639, %v684, %v692
    %v694 = vsel %vm641, %v688, %v693
    %v697 = vsel %vm133, %v642, %v691
    %v698 = vsel %vm133, %v645, %v694
    %v701 = vcombine.low %v697, %v698
    %v703 = vpack.c.bf16 %v701, %v701
    %v704 = vld [vmem:[%s4] sm:$0xf]
    %v705 = vld [vmem:[%s4 + $0x4] sm:$0xf]
    %v708 = vunpack.c.l.b16 %v704
    %v709 = vunpack.c.l.b16 %v705
    %v710 = vpack.c.b16 %v709, %v708
    %vm712 = vcmask 130048
    %v714 = vsel %vm712, %v703, 0
    %716 = vmatprep.subr.bf16.mxu0 0
    %717 = vmatpush1.bf16.msra.mxu0 %v710
    %718 = vmatprep.subr.bf16.mxu0 0
    %719 = vmatpush1.bf16.msra.mxu0 0
    %720 = vmatprep.subr.bf16.mxu0 0
    %721 = vmatpush1.bf16.msra.mxu0 0
    %722 = vmatprep.subr.bf16.mxu0 0
    %723 = vmatpush1.bf16.msra.mxu0 0
    %724 = vmatprep.subr.bf16.mxu0 0
    %725 = vmatpush1.bf16.msra.mxu0 0
    %726 = vmatprep.subr.bf16.mxu0 0
    %727 = vmatpush1.bf16.msra.mxu0 0
    %728 = vmatprep.subr.bf16.mxu0 0
    %729 = vmatpush1.bf16.msra.mxu0 0
    %730 = vmatprep.subr.bf16.mxu0 0
    %731 = vmatpush1.bf16.msra.mxu0 0
    %732 = vmatprep.subr.bf16.mxu0 0
    %733 = vmatpush1.bf16.msra.mxu0 0
    %734 = vmatprep.subr.bf16.mxu0 0
    %735 = vmatpush1.bf16.msra.mxu0 0
    %736 = vmatprep.subr.bf16.mxu0 0
    %737 = vmatpush1.bf16.msra.mxu0 0
    %738 = vmatprep.subr.bf16.mxu0 0
    %739 = vmatpush1.bf16.msra.mxu0 0
    %740 = vmatprep.subr.bf16.mxu0 0
    %741 = vmatpush1.bf16.msra.mxu0 0
    %742 = vmatprep.subr.bf16.mxu0 0
    %743 = vmatpush1.bf16.msra.mxu0 0
    %744 = vmatprep.subr.bf16.mxu0 0
    %745 = vmatpush1.bf16.msra.mxu0 0
    %746 = vmatprep.subr.bf16.mxu0 0
    %747 = vmatpush1.bf16.msra.mxu0 0
    %748 = vmatprep.mubr.bf16.mxu0 0
    %749 = vmatmul.mubr.bf16.gmra.mrb[0].mxu0 %v714
    %v750 = vpop.f32.mrb[0].mxu0
    %v751 = vadd.f32 0.0, %v750
    %v752 = vpop.f32.mrb[0].mxu0
    %v753 = vpop.f32.mrb[0].mxu0
    %v754 = vpop.f32.mrb[0].mxu0
    %755 = vdwg.mxu0
    %vm756 = vcmask 523264
    %v757 = vsel %vm756, %v751, 0.0
    %v758 = vrot.slane %v757, 4
    %v759 = vadd.f32 %v757, %v758
    %v760 = vrot.slane %v759, 2
    %v761 = vadd.f32 %v759, %v760
    %v762 = vrot.slane %v761, 1
    %v763 = vadd.f32 %v761, %v762
    %v764 = vmul.f32 %v763, 0.125
    %v765 = vsub.f32 %v751, %v764
    %v766 = vmul.f32 %v765, %v765
    %v767 = vsel %vm756, %v766, 0.0
    %v768 = vrot.slane %v767, 4
    %v769 = vadd.f32 %v767, %v768
    %v770 = vrot.slane %v769, 2
    %v771 = vadd.f32 %v769, %v770
    %v772 = vrot.slane %v771, 1
    %v773 = vadd.f32 %v771, %v772
    %v774 = vmul.f32 %v773, 0.125
    %v775 = vadd.f32 %v774, 1e-05
    %v776 = vrsqrt.pop %v775
    %v777 = vmul.f32 %v765, %v776
    %v778 = vmul.f32 %v777, 0.01
    %v779 = vmax.f32 %v777, %v778
    %v781 = vcombine.high %v779, %v779
    %v783 = vld [vmem:[%s5] sm:$0x3]
    %v784 = vld [vmem:[%s5 + $0x2] sm:$0x3]
    %v785 = vpack.c.bf16 %v779, %v779
    %v786 = vpack.c.bf16 %v781, %v781
    %v788 = vsel %vm47, %v783, 0
    %v791 = vsel %vm51, %v785, 0
    %793 = vmatprep.subr.bf16.mxu0 0
    %794 = vmatpush1.bf16.msra.mxu0 %v791
    %795 = vmatprep.subr.bf16.mxu0 0
    %796 = vmatpush1.bf16.msra.mxu0 0
    %797 = vmatprep.subr.bf16.mxu0 0
    %798 = vmatpush1.bf16.msra.mxu0 0
    %799 = vmatprep.subr.bf16.mxu0 0
    %800 = vmatpush1.bf16.msra.mxu0 0
    %801 = vmatprep.subr.bf16.mxu0 0
    %802 = vmatpush1.bf16.msra.mxu0 0
    %803 = vmatprep.subr.bf16.mxu0 0
    %804 = vmatpush1.bf16.msra.mxu0 0
    %805 = vmatprep.subr.bf16.mxu0 0
    %806 = vmatpush1.bf16.msra.mxu0 0
    %807 = vmatprep.subr.bf16.mxu0 0
    %808 = vmatpush1.bf16.msra.mxu0 0
    %809 = vmatprep.subr.bf16.mxu0 0
    %810 = vmatpush1.bf16.msra.mxu0 0
    %811 = vmatprep.subr.bf16.mxu0 0
    %812 = vmatpush1.bf16.msra.mxu0 0
    %813 = vmatprep.subr.bf16.mxu0 0
    %814 = vmatpush1.bf16.msra.mxu0 0
    %815 = vmatprep.subr.bf16.mxu0 0
    %816 = vmatpush1.bf16.msra.mxu0 0
    %817 = vmatprep.subr.bf16.mxu0 0
    %818 = vmatpush1.bf16.msra.mxu0 0
    %819 = vmatprep.subr.bf16.mxu0 0
    %820 = vmatpush1.bf16.msra.mxu0 0
    %821 = vmatprep.subr.bf16.mxu0 0
    %822 = vmatpush1.bf16.msra.mxu0 0
    %823 = vmatprep.subr.bf16.mxu0 0
    %824 = vmatpush1.bf16.msra.mxu0 0
    %825 = vmatprep.mubr.bf16.mxu0 0
    %826 = vmatmul.mubr.bf16.gmra.mrb[0].mxu0 %v788
    %v827 = vpop.f32.mrb[0].mxu0
    %v828 = vadd.f32 0.0, %v827
    %v829 = vpop.f32.mrb[0].mxu0
    %v830 = vpop.f32.mrb[0].mxu0
    %v831 = vpop.f32.mrb[0].mxu0
    %832 = vdwg.mxu0
    %v834 = vsel %vm47, %v784, 0
    %v837 = vsel %vm51, %v786, 0
    %839 = vmatprep.subr.bf16.mxu0 0
    %840 = vmatpush1.bf16.msra.mxu0 %v837
    %841 = vmatprep.subr.bf16.mxu0 0
    %842 = vmatpush1.bf16.msra.mxu0 0
    %843 = vmatprep.subr.bf16.mxu0 0
    %844 = vmatpush1.bf16.msra.mxu0 0
    %845 = vmatprep.subr.bf16.mxu0 0
    %846 = vmatpush1.bf16.msra.mxu0 0
    %847 = vmatprep.subr.bf16.mxu0 0
    %848 = vmatpush1.bf16.msra.mxu0 0
    %849 = vmatprep.subr.bf16.mxu0 0
    %850 = vmatpush1.bf16.msra.mxu0 0
    %851 = vmatprep.subr.bf16.mxu0 0
    %852 = vmatpush1.bf16.msra.mxu0 0
    %853 = vmatprep.subr.bf16.mxu0 0
    %854 = vmatpush1.bf16.msra.mxu0 0
    %855 = vmatprep.subr.bf16.mxu0 0
    %856 = vmatpush1.bf16.msra.mxu0 0
    %857 = vmatprep.subr.bf16.mxu0 0
    %858 = vmatpush1.bf16.msra.mxu0 0
    %859 = vmatprep.subr.bf16.mxu0 0
    %860 = vmatpush1.bf16.msra.mxu0 0
    %861 = vmatprep.subr.bf16.mxu0 0
    %862 = vmatpush1.bf16.msra.mxu0 0
    %863 = vmatprep.subr.bf16.mxu0 0
    %864 = vmatpush1.bf16.msra.mxu0 0
    %865 = vmatprep.subr.bf16.mxu0 0
    %866 = vmatpush1.bf16.msra.mxu0 0
    %867 = vmatprep.subr.bf16.mxu0 0
    %868 = vmatpush1.bf16.msra.mxu0 0
    %869 = vmatprep.subr.bf16.mxu0 0
    %870 = vmatpush1.bf16.msra.mxu0 0
    %871 = vmatprep.mubr.bf16.mxu0 0
    %872 = vmatmul.mubr.bf16.gmra.mrb[0].mxu0 %v834
    %v873 = vpop.f32.mrb[0].mxu0
    %v874 = vadd.f32 0.0, %v873
    %v875 = vpop.f32.mrb[0].mxu0
    %v876 = vpop.f32.mrb[0].mxu0
    %v877 = vpop.f32.mrb[0].mxu0
    %878 = vdwg.mxu0
    %v879 = vld [vmem:[%s6] sm:$0xf]
    %v880 = vld [vmem:[%s6 + $0x4] sm:$0xf]
    %v881 = vmul.f32 %v828, %v879
    %v882 = vmul.f32 %v874, %v880
    %885 = vrot.lane.b32.xlu0 %v881, 124
    %v886 = vpop.permute.xlu0 %885
    %887 = vrot.lane.b32.xlu0 %v882, 124
    %v888 = vpop.permute.xlu0 %887
    %891 = vrot.lane.b32.xlu0 %v881, 120
    %v892 = vpop.permute.xlu0 %891
    %893 = vrot.lane.b32.xlu0 %v882, 120
    %v894 = vpop.permute.xlu0 %893
    %897 = vrot.lane.b32.xlu0 %v881, 116
    %v898 = vpop.permute.xlu0 %897
    %899 = vrot.lane.b32.xlu0 %v882, 116
    %v900 = vpop.permute.xlu0 %899
    %903 = vrot.lane.b32.xlu0 %v881, 112
    %v904 = vpop.permute.xlu0 %903
    %905 = vrot.lane.b32.xlu0 %v882, 112
    %v906 = vpop.permute.xlu0 %905
    %909 = vrot.lane.b32.xlu0 %v881, 108
    %v910 = vpop.permute.xlu0 %909
    %911 = vrot.lane.b32.xlu0 %v882, 108
    %v912 = vpop.permute.xlu0 %911
    %915 = vrot.lane.b32.xlu0 %v881, 104
    %v916 = vpop.permute.xlu0 %915
    %917 = vrot.lane.b32.xlu0 %v882, 104
    %v918 = vpop.permute.xlu0 %917
    %921 = vrot.lane.b32.xlu0 %v881, 100
    %v922 = vpop.permute.xlu0 %921
    %923 = vrot.lane.b32.xlu0 %v882, 100
    %v924 = vpop.permute.xlu0 %923
    %927 = vrot.lane.b32.xlu0 %v881, 96
    %v928 = vpop.permute.xlu0 %927
    %929 = vrot.lane.b32.xlu0 %v882, 96
    %v930 = vpop.permute.xlu0 %929
    %933 = vrot.lane.b32.xlu0 %v881, 92
    %v934 = vpop.permute.xlu0 %933
    %935 = vrot.lane.b32.xlu0 %v882, 92
    %v936 = vpop.permute.xlu0 %935
    %939 = vrot.lane.b32.xlu0 %v881, 88
    %v940 = vpop.permute.xlu0 %939
    %941 = vrot.lane.b32.xlu0 %v882, 88
    %v942 = vpop.permute.xlu0 %941
    %945 = vrot.lane.b32.xlu0 %v881, 84
    %v946 = vpop.permute.xlu0 %945
    %947 = vrot.lane.b32.xlu0 %v882, 84
    %v948 = vpop.permute.xlu0 %947
    %951 = vrot.lane.b32.xlu0 %v881, 80
    %v952 = vpop.permute.xlu0 %951
    %953 = vrot.lane.b32.xlu0 %v882, 80
    %v954 = vpop.permute.xlu0 %953
    %957 = vrot.lane.b32.xlu0 %v881, 76
    %v958 = vpop.permute.xlu0 %957
    %959 = vrot.lane.b32.xlu0 %v882, 76
    %v960 = vpop.permute.xlu0 %959
    %963 = vrot.lane.b32.xlu0 %v881, 72
    %v964 = vpop.permute.xlu0 %963
    %965 = vrot.lane.b32.xlu0 %v882, 72
    %v966 = vpop.permute.xlu0 %965
    %969 = vrot.lane.b32.xlu0 %v881, 68
    %v970 = vpop.permute.xlu0 %969
    %971 = vrot.lane.b32.xlu0 %v882, 68
    %v972 = vpop.permute.xlu0 %971
    %v975 = vcombine.low %v881, %v892
    %v977 = vunpack.c.l.s4 1983009808
    %v978 = vunpack.c.0.s8 %v977
    %v979 = vlaneseq
    %v980 = vshrl.u32 %v979, 7
    %v981 = vsub.s32 %v978, %v980
    %v982 = vrot.slane %v975, %v981
    %v983 = vcombine.low %v886, %v898
    %v985 = vunpack.c.l.s4 1983009808
    %v986 = vunpack.c.0.s8 %v985
    %v987 = vlaneseq
    %v988 = vshrl.u32 %v987, 7
    %v989 = vsub.s32 %v986, %v988
    %v990 = vrot.slane %v983, %v989
    %v991 = vcombine.low %v904, %v916
    %v993 = vunpack.c.l.s4 1983009808
    %v994 = vunpack.c.0.s8 %v993
    %v995 = vlaneseq
    %v996 = vshrl.u32 %v995, 7
    %v997 = vsub.s32 %v994, %v996
    %v998 = vrot.slane %v991, %v997
    %v999 = vcombine.low %v910, %v922
    %v1001 = vunpack.c.l.s4 1983009808
    %v1002 = vunpack.c.0.s8 %v1001
    %v1003 = vlaneseq
    %v1004 = vshrl.u32 %v1003, 7
    %v1005 = vsub.s32 %v1002, %v1004
    %v1006 = vrot.slane %v999, %v1005
    %v1007 = vcombine.low %v982, %v990
    %v1008 = vcombine.high %v982, %v990
    %v1010 = vunpack.c.l.s4 1934713408
    %v1011 = vunpack.c.0.s8 %v1010
    %v1012 = vlaneseq
    %v1013 = vshrl.u32 %v1012, 7
    %v1014 = vsub.s32 %v1011, %v1013
    %v1015 = vrot.slane %v1007, %v1014
    %v1017 = vunpack.c.l.s4 1934713408
    %v1018 = vunpack.c.0.s8 %v1017
    %v1019 = vlaneseq
    %v1020 = vshrl.u32 %v1019, 7
    %v1021 = vsub.s32 %v1018, %v1020
    %v1022 = vrot.slane %v1008, %v1021
    %v1023 = vcombine.low %v998, %v1006
    %v1024 = vcombine.high %v998, %v1006
    %v1026 = vunpack.c.l.s4 1934713408
    %v1027 = vunpack.c.0.s8 %v1026
    %v1028 = vlaneseq
    %v1029 = vshrl.u32 %v1028, 7
    %v1030 = vsub.s32 %v1027, %v1029
    %v1031 = vrot.slane %v1023, %v1030
    %v1033 = vunpack.c.l.s4 1934713408
    %v1034 = vunpack.c.0.s8 %v1033
    %v1035 = vlaneseq
    %v1036 = vshrl.u32 %v1035, 7
    %v1037 = vsub.s32 %v1034, %v1036
    %v1038 = vrot.slane %v1024, %v1037
    %v1039 = vcombine.low %v1015, %v1031
    %v1040 = vcombine.high %v1015, %v1031
    %v1041 = vcombine.low %v1022, %v1038
    %v1042 = vcombine.high %v1022, %v1038
    %v1043 = vcombine.low %v928, %v940
    %v1045 = vunpack.c.l.s4 1983009808
    %v1046 = vunpack.c.0.s8 %v1045
    %v1047 = vlaneseq
    %v1048 = vshrl.u32 %v1047, 7
    %v1049 = vsub.s32 %v1046, %v1048
    %v1050 = vrot.slane %v1043, %v1049
    %v1051 = vcombine.low %v934, %v946
    %v1053 = vunpack.c.l.s4 1983009808
    %v1054 = vunpack.c.0.s8 %v1053
    %v1055 = vlaneseq
    %v1056 = vshrl.u32 %v1055, 7
    %v1057 = vsub.s32 %v1054, %v1056
    %v1058 = vrot.slane %v1051, %v1057
    %v1059 = vcombine.low %v952, %v964
    %v1061 = vunpack.c.l.s4 1983009808
    %v1062 = vunpack.c.0.s8 %v1061
    %v1063 = vlaneseq
    %v1064 = vshrl.u32 %v1063, 7
    %v1065 = vsub.s32 %v1062, %v1064
    %v1066 = vrot.slane %v1059, %v1065
    %v1067 = vcombine.low %v958, %v970
    %v1069 = vunpack.c.l.s4 1983009808
    %v1070 = vunpack.c.0.s8 %v1069
    %v1071 = vlaneseq
    %v1072 = vshrl.u32 %v1071, 7
    %v1073 = vsub.s32 %v1070, %v1072
    %v1074 = vrot.slane %v1067, %v1073
    %v1075 = vcombine.low %v1050, %v1058
    %v1076 = vcombine.high %v1050, %v1058
    %v1078 = vunpack.c.l.s4 1934713408
    %v1079 = vunpack.c.0.s8 %v1078
    %v1080 = vlaneseq
    %v1081 = vshrl.u32 %v1080, 7
    %v1082 = vsub.s32 %v1079, %v1081
    %v1083 = vrot.slane %v1075, %v1082
    %v1085 = vunpack.c.l.s4 1934713408
    %v1086 = vunpack.c.0.s8 %v1085
    %v1087 = vlaneseq
    %v1088 = vshrl.u32 %v1087, 7
    %v1089 = vsub.s32 %v1086, %v1088
    %v1090 = vrot.slane %v1076, %v1089
    %v1091 = vcombine.low %v1066, %v1074
    %v1092 = vcombine.high %v1066, %v1074
    %v1094 = vunpack.c.l.s4 1934713408
    %v1095 = vunpack.c.0.s8 %v1094
    %v1096 = vlaneseq
    %v1097 = vshrl.u32 %v1096, 7
    %v1098 = vsub.s32 %v1095, %v1097
    %v1099 = vrot.slane %v1091, %v1098
    %v1101 = vunpack.c.l.s4 1934713408
    %v1102 = vunpack.c.0.s8 %v1101
    %v1103 = vlaneseq
    %v1104 = vshrl.u32 %v1103, 7
    %v1105 = vsub.s32 %v1102, %v1104
    %v1106 = vrot.slane %v1092, %v1105
    %v1107 = vcombine.low %v1083, %v1099
    %v1108 = vcombine.high %v1083, %v1099
    %v1109 = vcombine.low %v1090, %v1106
    %v1110 = vcombine.high %v1090, %v1106
    %v1111 = vcombine.low %v882, %v894
    %v1113 = vunpack.c.l.s4 1983009808
    %v1114 = vunpack.c.0.s8 %v1113
    %v1115 = vlaneseq
    %v1116 = vshrl.u32 %v1115, 7
    %v1117 = vsub.s32 %v1114, %v1116
    %v1118 = vrot.slane %v1111, %v1117
    %v1119 = vcombine.low %v888, %v900
    %v1121 = vunpack.c.l.s4 1983009808
    %v1122 = vunpack.c.0.s8 %v1121
    %v1123 = vlaneseq
    %v1124 = vshrl.u32 %v1123, 7
    %v1125 = vsub.s32 %v1122, %v1124
    %v1126 = vrot.slane %v1119, %v1125
    %v1127 = vcombine.low %v906, %v918
    %v1129 = vunpack.c.l.s4 1983009808
    %v1130 = vunpack.c.0.s8 %v1129
    %v1131 = vlaneseq
    %v1132 = vshrl.u32 %v1131, 7
    %v1133 = vsub.s32 %v1130, %v1132
    %v1134 = vrot.slane %v1127, %v1133
    %v1135 = vcombine.low %v912, %v924
    %v1137 = vunpack.c.l.s4 1983009808
    %v1138 = vunpack.c.0.s8 %v1137
    %v1139 = vlaneseq
    %v1140 = vshrl.u32 %v1139, 7
    %v1141 = vsub.s32 %v1138, %v1140
    %v1142 = vrot.slane %v1135, %v1141
    %v1143 = vcombine.low %v1118, %v1126
    %v1144 = vcombine.high %v1118, %v1126
    %v1146 = vunpack.c.l.s4 1934713408
    %v1147 = vunpack.c.0.s8 %v1146
    %v1148 = vlaneseq
    %v1149 = vshrl.u32 %v1148, 7
    %v1150 = vsub.s32 %v1147, %v1149
    %v1151 = vrot.slane %v1143, %v1150
    %v1153 = vunpack.c.l.s4 1934713408
    %v1154 = vunpack.c.0.s8 %v1153
    %v1155 = vlaneseq
    %v1156 = vshrl.u32 %v1155, 7
    %v1157 = vsub.s32 %v1154, %v1156
    %v1158 = vrot.slane %v1144, %v1157
    %v1159 = vcombine.low %v1134, %v1142
    %v1160 = vcombine.high %v1134, %v1142
    %v1162 = vunpack.c.l.s4 1934713408
    %v1163 = vunpack.c.0.s8 %v1162
    %v1164 = vlaneseq
    %v1165 = vshrl.u32 %v1164, 7
    %v1166 = vsub.s32 %v1163, %v1165
    %v1167 = vrot.slane %v1159, %v1166
    %v1169 = vunpack.c.l.s4 1934713408
    %v1170 = vunpack.c.0.s8 %v1169
    %v1171 = vlaneseq
    %v1172 = vshrl.u32 %v1171, 7
    %v1173 = vsub.s32 %v1170, %v1172
    %v1174 = vrot.slane %v1160, %v1173
    %v1175 = vcombine.low %v1151, %v1167
    %v1176 = vcombine.high %v1151, %v1167
    %v1177 = vcombine.low %v1158, %v1174
    %v1178 = vcombine.high %v1158, %v1174
    %v1179 = vcombine.low %v930, %v942
    %v1181 = vunpack.c.l.s4 1983009808
    %v1182 = vunpack.c.0.s8 %v1181
    %v1183 = vlaneseq
    %v1184 = vshrl.u32 %v1183, 7
    %v1185 = vsub.s32 %v1182, %v1184
    %v1186 = vrot.slane %v1179, %v1185
    %v1187 = vcombine.low %v936, %v948
    %v1189 = vunpack.c.l.s4 1983009808
    %v1190 = vunpack.c.0.s8 %v1189
    %v1191 = vlaneseq
    %v1192 = vshrl.u32 %v1191, 7
    %v1193 = vsub.s32 %v1190, %v1192
    %v1194 = vrot.slane %v1187, %v1193
    %v1195 = vcombine.low %v954, %v966
    %v1197 = vunpack.c.l.s4 1983009808
    %v1198 = vunpack.c.0.s8 %v1197
    %v1199 = vlaneseq
    %v1200 = vshrl.u32 %v1199, 7
    %v1201 = vsub.s32 %v1198, %v1200
    %v1202 = vrot.slane %v1195, %v1201
    %v1203 = vcombine.low %v960, %v972
    %v1205 = vunpack.c.l.s4 1983009808
    %v1206 = vunpack.c.0.s8 %v1205
    %v1207 = vlaneseq
    %v1208 = vshrl.u32 %v1207, 7
    %v1209 = vsub.s32 %v1206, %v1208
    %v1210 = vrot.slane %v1203, %v1209
    %v1211 = vcombine.low %v1186, %v1194
    %v1212 = vcombine.high %v1186, %v1194
    %v1214 = vunpack.c.l.s4 1934713408
    %v1215 = vunpack.c.0.s8 %v1214
    %v1216 = vlaneseq
    %v1217 = vshrl.u32 %v1216, 7
    %v1218 = vsub.s32 %v1215, %v1217
    %v1219 = vrot.slane %v1211, %v1218
    %v1221 = vunpack.c.l.s4 1934713408
    %v1222 = vunpack.c.0.s8 %v1221
    %v1223 = vlaneseq
    %v1224 = vshrl.u32 %v1223, 7
    %v1225 = vsub.s32 %v1222, %v1224
    %v1226 = vrot.slane %v1212, %v1225
    %v1227 = vcombine.low %v1202, %v1210
    %v1228 = vcombine.high %v1202, %v1210
    %v1230 = vunpack.c.l.s4 1934713408
    %v1231 = vunpack.c.0.s8 %v1230
    %v1232 = vlaneseq
    %v1233 = vshrl.u32 %v1232, 7
    %v1234 = vsub.s32 %v1231, %v1233
    %v1235 = vrot.slane %v1227, %v1234
    %v1237 = vunpack.c.l.s4 1934713408
    %v1238 = vunpack.c.0.s8 %v1237
    %v1239 = vlaneseq
    %v1240 = vshrl.u32 %v1239, 7
    %v1241 = vsub.s32 %v1238, %v1240
    %v1242 = vrot.slane %v1228, %v1241
    %v1243 = vcombine.low %v1219, %v1235
    %v1244 = vcombine.high %v1219, %v1235
    %v1245 = vcombine.low %v1226, %v1242
    %v1246 = vcombine.high %v1226, %v1242
    %v1247 = vsel %vm47, %v1039, 0.0
    %1248 = vadd.xlane.f32.xlu0 %v1247
    %v1249 = vpop.xlane.xlu0 %1248
    %v1250 = vsel %vm47, %v1107, 0.0
    %1251 = vadd.xlane.f32.xlu0 %v1250
    %v1252 = vpop.xlane.xlu0 %1251
    %v1253 = vsel %vm47, %v1040, 0.0
    %1254 = vadd.xlane.f32.xlu0 %v1253
    %v1255 = vpop.xlane.xlu0 %1254
    %v1256 = vsel %vm47, %v1108, 0.0
    %1257 = vadd.xlane.f32.xlu0 %v1256
    %v1258 = vpop.xlane.xlu0 %1257
    %v1259 = vsel %vm47, %v1041, 0.0
    %1260 = vadd.xlane.f32.xlu0 %v1259
    %v1261 = vpop.xlane.xlu0 %1260
    %v1262 = vsel %vm47, %v1109, 0.0
    %1263 = vadd.xlane.f32.xlu0 %v1262
    %v1264 = vpop.xlane.xlu0 %1263
    %v1265 = vsel %vm47, %v1042, 0.0
    %1266 = vadd.xlane.f32.xlu0 %v1265
    %v1267 = vpop.xlane.xlu0 %1266
    %v1268 = vsel %vm47, %v1110, 0.0
    %1269 = vadd.xlane.f32.xlu0 %v1268
    %v1270 = vpop.xlane.xlu0 %1269
    %v1271 = vsel %vm47, %v1175, 0.0
    %1272 = vadd.xlane.f32.xlu0 %v1271
    %v1273 = vpop.xlane.xlu0 %1272
    %v1274 = vsel %vm47, %v1243, 0.0
    %1275 = vadd.xlane.f32.xlu0 %v1274
    %v1276 = vpop.xlane.xlu0 %1275
    %v1277 = vsel %vm47, %v1176, 0.0
    %1278 = vadd.xlane.f32.xlu0 %v1277
    %v1279 = vpop.xlane.xlu0 %1278
    %v1280 = vsel %vm47, %v1244, 0.0
    %1281 = vadd.xlane.f32.xlu0 %v1280
    %v1282 = vpop.xlane.xlu0 %1281
    %v1283 = vsel %vm47, %v1177, 0.0
    %1284 = vadd.xlane.f32.xlu0 %v1283
    %v1285 = vpop.xlane.xlu0 %1284
    %v1286 = vsel %vm47, %v1245, 0.0
    %1287 = vadd.xlane.f32.xlu0 %v1286
    %v1288 = vpop.xlane.xlu0 %1287
    %v1289 = vsel %vm47, %v1178, 0.0
    %1290 = vadd.xlane.f32.xlu0 %v1289
    %v1291 = vpop.xlane.xlu0 %1290
    %v1292 = vsel %vm47, %v1246, 0.0
    %1293 = vadd.xlane.f32.xlu0 %v1292
    %v1294 = vpop.xlane.xlu0 %1293
    %v1303 = vlaneseq
    %v1304 = vshrl.u32 %v1303, 7
    %v1305 = vsub.s32 %v604, %v1304
    %v1306 = vrot.slane %v1249, %v1305
    %v1307 = vlaneseq
    %v1308 = vshrl.u32 %v1307, 7
    %v1309 = vsub.s32 %v656, %v1308
    %v1310 = vrot.slane %v1252, %v1309
    %vm1311 = vcmask 130112
    %v1312 = vsel %vm1311, %v1310, %v1306
    %v1313 = vlaneseq
    %v1314 = vshrl.u32 %v1313, 7
    %v1315 = vsub.s32 %v604, %v1314
    %v1316 = vrot.slane %v1255, %v1315
    %v1317 = vlaneseq
    %v1318 = vshrl.u32 %v1317, 7
    %v1319 = vsub.s32 %v656, %v1318
    %v1320 = vrot.slane %v1258, %v1319
    %v1321 = vsel %vm1311, %v1320, %v1316
    %v1322 = vlaneseq
    %v1323 = vshrl.u32 %v1322, 7
    %v1324 = vsub.s32 %v604, %v1323
    %v1325 = vrot.slane %v1273, %v1324
    %v1326 = vlaneseq
    %v1327 = vshrl.u32 %v1326, 7
    %v1328 = vsub.s32 %v656, %v1327
    %v1329 = vrot.slane %v1276, %v1328
    %v1330 = vsel %vm1311, %v1329, %v1325
    %v1331 = vlaneseq
    %v1332 = vshrl.u32 %v1331, 7
    %v1333 = vsub.s32 %v604, %v1332
    %v1334 = vrot.slane %v1279, %v1333
    %v1335 = vlaneseq
    %v1336 = vshrl.u32 %v1335, 7
    %v1337 = vsub.s32 %v656, %v1336
    %v1338 = vrot.slane %v1282, %v1337
    %v1339 = vsel %vm1311, %v1338, %v1334
    %v1340 = vsel %vm637, %v1321, %v1312
    %v1341 = vsel %vm637, %v1339, %v1330
    %v1352 = vadd.s32 %v604, 4294967280
    %v1353 = vlaneseq
    %v1354 = vshrl.u32 %v1353, 7
    %v1355 = vsub.s32 %v1352, %v1354
    %v1356 = vrot.slane %v1261, %v1355
    %v1357 = vadd.s32 %v604, 4294967272
    %v1358 = vlaneseq
    %v1359 = vshrl.u32 %v1358, 7
    %v1360 = vsub.s32 %v1357, %v1359
    %v1361 = vrot.slane %v1264, %v1360
    %vm1362 = vcmask 261312
    %v1363 = vsel %vm1362, %v1361, %v1356
    %v1364 = vlaneseq
    %v1365 = vshrl.u32 %v1364, 7
    %v1366 = vsub.s32 %v1352, %v1365
    %v1367 = vrot.slane %v1267, %v1366
    %v1368 = vlaneseq
    %v1369 = vshrl.u32 %v1368, 7
    %v1370 = vsub.s32 %v1357, %v1369
    %v1371 = vrot.slane %v1270, %v1370
    %v1372 = vsel %vm1362, %v1371, %v1367
    %v1373 = vlaneseq
    %v1374 = vshrl.u32 %v1373, 7
    %v1375 = vsub.s32 %v1352, %v1374
    %v1376 = vrot.slane %v1285, %v1375
    %v1377 = vlaneseq
    %v1378 = vshrl.u32 %v1377, 7
    %v1379 = vsub.s32 %v1357, %v1378
    %v1380 = vrot.slane %v1288, %v1379
    %v1381 = vsel %vm1362, %v1380, %v1376
    %v1382 = vlaneseq
    %v1383 = vshrl.u32 %v1382, 7
    %v1384 = vsub.s32 %v1352, %v1383
    %v1385 = vrot.slane %v1291, %v1384
    %v1386 = vlaneseq
    %v1387 = vshrl.u32 %v1386, 7
    %v1388 = vsub.s32 %v1357, %v1387
    %v1389 = vrot.slane %v1294, %v1388
    %v1390 = vsel %vm1362, %v1389, %v1385
    %v1391 = vsel %vm637, %v1372, %v1363
    %v1392 = vsel %vm637, %v1390, %v1381
    %v1395 = vsel %vm712, %v1340, %v1391
    %v1396 = vsel %vm712, %v1341, %v1392
    %v1399 = vcombine.low %v1395, %v1396
    %v1401 = vunpack.c.l.s4 1983009808
    %v1402 = vunpack.c.0.s8 %v1401
    %v1403 = vlaneseq
    %v1404 = vshrl.u32 %v1403, 7
    %v1405 = vsub.s32 %v1402, %v1404
    %v1406 = vrot.slane %v1399, %v1405
    %v1408 = vpack.c.bf16 %v1406, %v1406
    %v1409 = vld [vmem:[%s7] sm:$0xf]
    %v1410 = vld [vmem:[%s7 + $0x4] sm:$0xf]
    %v1411 = vld [vmem:[%s7 + $0x8] sm:$0xf]
    %v1412 = vld [vmem:[%s7 + $0xc] sm:$0xf]
    %v1417 = vunpack.c.l.b16 %v1409
    %v1418 = vunpack.c.l.b16 %v1410
    %v1419 = vunpack.c.l.b16 %v1411
    %v1420 = vunpack.c.l.b16 %v1412
    %v1421 = vpack.c.b16 %v1418, %v1417
    %v1422 = vpack.c.b16 %v1420, %v1419
    %v1426 = vsel %vm96, %v1408, 0
    %1428 = vmatprep.subr.bf16.mxu0 0
    %1429 = vmatpush1.bf16.msra.mxu0 %v1421
    %1430 = vmatprep.subr.bf16.mxu0 0
    %1431 = vmatpush1.bf16.msra.mxu0 %v1422
    %1432 = vmatprep.subr.bf16.mxu0 0
    %1433 = vmatpush1.bf16.msra.mxu0 0
    %1434 = vmatprep.subr.bf16.mxu0 0
    %1435 = vmatpush1.bf16.msra.mxu0 0
    %1436 = vmatprep.subr.bf16.mxu0 0
    %1437 = vmatpush1.bf16.msra.mxu0 0
    %1438 = vmatprep.subr.bf16.mxu0 0
    %1439 = vmatpush1.bf16.msra.mxu0 0
    %1440 = vmatprep.subr.bf16.mxu0 0
    %1441 = vmatpush1.bf16.msra.mxu0 0
    %1442 = vmatprep.subr.bf16.mxu0 0
    %1443 = vmatpush1.bf16.msra.mxu0 0
    %1444 = vmatprep.subr.bf16.mxu0 0
    %1445 = vmatpush1.bf16.msra.mxu0 0
    %1446 = vmatprep.subr.bf16.mxu0 0
    %1447 = vmatpush1.bf16.msra.mxu0 0
    %1448 = vmatprep.subr.bf16.mxu0 0
    %1449 = vmatpush1.bf16.msra.mxu0 0
    %1450 = vmatprep.subr.bf16.mxu0 0
    %1451 = vmatpush1.bf16.msra.mxu0 0
    %1452 = vmatprep.subr.bf16.mxu0 0
    %1453 = vmatpush1.bf16.msra.mxu0 0
    %1454 = vmatprep.subr.bf16.mxu0 0
    %1455 = vmatpush1.bf16.msra.mxu0 0
    %1456 = vmatprep.subr.bf16.mxu0 0
    %1457 = vmatpush1.bf16.msra.mxu0 0
    %1458 = vmatprep.subr.bf16.mxu0 0
    %1459 = vmatpush1.bf16.msra.mxu0 0
    %1460 = vmatprep.mubr.bf16.mxu0 0
    %1461 = vmatmul.mubr.bf16.gmra.mrb[0].mxu0 %v1426
    %v1462 = vpop.f32.mrb[0].mxu0
    %v1463 = vadd.f32 0.0, %v1462
    %v1464 = vpop.f32.mrb[0].mxu0
    %v1465 = vpop.f32.mrb[0].mxu0
    %v1466 = vpop.f32.mrb[0].mxu0
    %1467 = vdwg.mxu0
    %vm1468 = vcmask 519168
    %v1469 = vsel %vm1468, %v1463, 0.0
    %v1470 = vrot.slane %v1469, 4
    %v1471 = vadd.f32 %v1469, %v1470
    %v1472 = vrot.slane %v1471, 2
    %v1473 = vadd.f32 %v1471, %v1472
    %v1474 = vrot.slane %v1473, 1
    %v1475 = vadd.f32 %v1473, %v1474
    %v1476 = vmul.f32 %v1475, 0.25
    %v1477 = vsub.f32 %v1463, %v1476
    %v1478 = vmul.f32 %v1477, %v1477
    %v1479 = vsel %vm1468, %v1478, 0.0
    %v1480 = vrot.slane %v1479, 4
    %v1481 = vadd.f32 %v1479, %v1480
    %v1482 = vrot.slane %v1481, 2
    %v1483 = vadd.f32 %v1481, %v1482
    %v1484 = vrot.slane %v1483, 1
    %v1485 = vadd.f32 %v1483, %v1484
    %v1486 = vmul.f32 %v1485, 0.25
    %v1487 = vadd.f32 %v1486, 1e-05
    %v1488 = vrsqrt.pop %v1487
    %v1489 = vmul.f32 %v1477, %v1488
    %v1490 = vmul.f32 %v1489, 0.01
    %v1491 = vmax.f32 %v1489, %v1490
    %v1494 = vunpack.c.l.s4 1983009808
    %v1495 = vunpack.c.0.s8 %v1494
    %v1496 = vlaneseq
    %v1497 = vshrl.u32 %v1496, 7
    %v1498 = vsub.s32 %v1495, %v1497
    %v1499 = vrot.slane %v1491, %v1498
    %v1500 = vcombine.high %v1499, %v1499
    %v1503 = vld [vmem:[%s8] sm:$0x1]
    %v1504 = vld [vmem:[%s8 + $0x1] sm:$0x1]
    %v1505 = vpack.c.bf16 %v1499, %v1499
    %v1506 = vpack.c.bf16 %v1500, %v1500
    %vm1507 = vcmask 15360
    %v1509 = vsel %vm1507, %v1503, 0
    %vm1511 = vcmask 1040384
    %v1513 = vsel %vm1511, %v1505, 0
    %1515 = vmatprep.subr.bf16.mxu0 0
    %1516 = vmatpush1.bf16.msra.mxu0 %v1513
    %1517 = vmatprep.subr.bf16.mxu0 0
    %1518 = vmatpush1.bf16.msra.mxu0 0
    %1519 = vmatprep.subr.bf16.mxu0 0
    %1520 = vmatpush1.bf16.msra.mxu0 0
    %1521 = vmatprep.subr.bf16.mxu0 0
    %1522 = vmatpush1.bf16.msra.mxu0 0
    %1523 = vmatprep.subr.bf16.mxu0 0
    %1524 = vmatpush1.bf16.msra.mxu0 0
    %1525 = vmatprep.subr.bf16.mxu0 0
    %1526 = vmatpush1.bf16.msra.mxu0 0
    %1527 = vmatprep.subr.bf16.mxu0 0
    %1528 = vmatpush1.bf16.msra.mxu0 0
    %1529 = vmatprep.subr.bf16.mxu0 0
    %1530 = vmatpush1.bf16.msra.mxu0 0
    %1531 = vmatprep.subr.bf16.mxu0 0
    %1532 = vmatpush1.bf16.msra.mxu0 0
    %1533 = vmatprep.subr.bf16.mxu0 0
    %1534 = vmatpush1.bf16.msra.mxu0 0
    %1535 = vmatprep.subr.bf16.mxu0 0
    %1536 = vmatpush1.bf16.msra.mxu0 0
    %1537 = vmatprep.subr.bf16.mxu0 0
    %1538 = vmatpush1.bf16.msra.mxu0 0
    %1539 = vmatprep.subr.bf16.mxu0 0
    %1540 = vmatpush1.bf16.msra.mxu0 0
    %1541 = vmatprep.subr.bf16.mxu0 0
    %1542 = vmatpush1.bf16.msra.mxu0 0
    %1543 = vmatprep.subr.bf16.mxu0 0
    %1544 = vmatpush1.bf16.msra.mxu0 0
    %1545 = vmatprep.subr.bf16.mxu0 0
    %1546 = vmatpush1.bf16.msra.mxu0 0
    %1547 = vmatprep.mubr.bf16.mxu0 0
    %1548 = vmatmul.mubr.bf16.gmra.mrb[0].mxu0 %v1509
    %v1549 = vpop.f32.mrb[0].mxu0
    %v1550 = vadd.f32 0.0, %v1549
    %v1551 = vpop.f32.mrb[0].mxu0
    %v1552 = vpop.f32.mrb[0].mxu0
    %v1553 = vpop.f32.mrb[0].mxu0
    %1554 = vdwg.mxu0
    %v1556 = vsel %vm1507, %v1504, 0
    %v1559 = vsel %vm1511, %v1506, 0
    %1561 = vmatprep.subr.bf16.mxu0 0
    %1562 = vmatpush1.bf16.msra.mxu0 %v1559
    %1563 = vmatprep.subr.bf16.mxu0 0
    %1564 = vmatpush1.bf16.msra.mxu0 0
    %1565 = vmatprep.subr.bf16.mxu0 0
    %1566 = vmatpush1.bf16.msra.mxu0 0
    %1567 = vmatprep.subr.bf16.mxu0 0
    %1568 = vmatpush1.bf16.msra.mxu0 0
    %1569 = vmatprep.subr.bf16.mxu0 0
    %1570 = vmatpush1.bf16.msra.mxu0 0
    %1571 = vmatprep.subr.bf16.mxu0 0
    %1572 = vmatpush1.bf16.msra.mxu0 0
    %1573 = vmatprep.subr.bf16.mxu0 0
    %1574 = vmatpush1.bf16.msra.mxu0 0
    %1575 = vmatprep.subr.bf16.mxu0 0
    %1576 = vmatpush1.bf16.msra.mxu0 0
    %1577 = vmatprep.subr.bf16.mxu0 0
    %1578 = vmatpush1.bf16.msra.mxu0 0
    %1579 = vmatprep.subr.bf16.mxu0 0
    %1580 = vmatpush1.bf16.msra.mxu0 0
    %1581 = vmatprep.subr.bf16.mxu0 0
    %1582 = vmatpush1.bf16.msra.mxu0 0
    %1583 = vmatprep.subr.bf16.mxu0 0
    %1584 = vmatpush1.bf16.msra.mxu0 0
    %1585 = vmatprep.subr.bf16.mxu0 0
    %1586 = vmatpush1.bf16.msra.mxu0 0
    %1587 = vmatprep.subr.bf16.mxu0 0
    %1588 = vmatpush1.bf16.msra.mxu0 0
    %1589 = vmatprep.subr.bf16.mxu0 0
    %1590 = vmatpush1.bf16.msra.mxu0 0
    %1591 = vmatprep.subr.bf16.mxu0 0
    %1592 = vmatpush1.bf16.msra.mxu0 0
    %1593 = vmatprep.mubr.bf16.mxu0 0
    %1594 = vmatmul.mubr.bf16.gmra.mrb[0].mxu0 %v1556
    %v1595 = vpop.f32.mrb[0].mxu0
    %v1596 = vadd.f32 0.0, %v1595
    %v1597 = vpop.f32.mrb[0].mxu0
    %v1598 = vpop.f32.mrb[0].mxu0
    %v1599 = vpop.f32.mrb[0].mxu0
    %1600 = vdwg.mxu0
    %v1601 = vld [vmem:[%s9] sm:$0x3]
    %v1602 = vld [vmem:[%s9 + $0x2] sm:$0x3]
    %v1603 = vmul.f32 %v1550, %v1601
    %v1604 = vmul.f32 %v1596, %v1602
    %1607 = vrot.lane.b32.xlu0 %v1603, 124
    %v1608 = vpop.permute.xlu0 %1607
    %1609 = vrot.lane.b32.xlu0 %v1604, 124
    %v1610 = vpop.permute.xlu0 %1609
    %1613 = vrot.lane.b32.xlu0 %v1603, 120
    %v1614 = vpop.permute.xlu0 %1613
    %1615 = vrot.lane.b32.xlu0 %v1604, 120
    %v1616 = vpop.permute.xlu0 %1615
    %1619 = vrot.lane.b32.xlu0 %v1603, 116
    %v1620 = vpop.permute.xlu0 %1619
    %1621 = vrot.lane.b32.xlu0 %v1604, 116
    %v1622 = vpop.permute.xlu0 %1621
    %1625 = vrot.lane.b32.xlu0 %v1603, 112
    %v1626 = vpop.permute.xlu0 %1625
    %1627 = vrot.lane.b32.xlu0 %v1604, 112
    %v1628 = vpop.permute.xlu0 %1627
    %1631 = vrot.lane.b32.xlu0 %v1603, 108
    %v1632 = vpop.permute.xlu0 %1631
    %1633 = vrot.lane.b32.xlu0 %v1604, 108
    %v1634 = vpop.permute.xlu0 %1633
    %1637 = vrot.lane.b32.xlu0 %v1603, 104
    %v1638 = vpop.permute.xlu0 %1637
    %1639 = vrot.lane.b32.xlu0 %v1604, 104
    %v1640 = vpop.permute.xlu0 %1639
    %1643 = vrot.lane.b32.xlu0 %v1603, 100
    %v1644 = vpop.permute.xlu0 %1643
    %1645 = vrot.lane.b32.xlu0 %v1604, 100
    %v1646 = vpop.permute.xlu0 %1645
    %1649 = vrot.lane.b32.xlu0 %v1603, 96
    %v1650 = vpop.permute.xlu0 %1649
    %1651 = vrot.lane.b32.xlu0 %v1604, 96
    %v1652 = vpop.permute.xlu0 %1651
    %1655 = vrot.lane.b32.xlu0 %v1603, 92
    %v1656 = vpop.permute.xlu0 %1655
    %1657 = vrot.lane.b32.xlu0 %v1604, 92
    %v1658 = vpop.permute.xlu0 %1657
    %1661 = vrot.lane.b32.xlu0 %v1603, 88
    %v1662 = vpop.permute.xlu0 %1661
    %1663 = vrot.lane.b32.xlu0 %v1604, 88
    %v1664 = vpop.permute.xlu0 %1663
    %1667 = vrot.lane.b32.xlu0 %v1603, 84
    %v1668 = vpop.permute.xlu0 %1667
    %1669 = vrot.lane.b32.xlu0 %v1604, 84
    %v1670 = vpop.permute.xlu0 %1669
    %1673 = vrot.lane.b32.xlu0 %v1603, 80
    %v1674 = vpop.permute.xlu0 %1673
    %1675 = vrot.lane.b32.xlu0 %v1604, 80
    %v1676 = vpop.permute.xlu0 %1675
    %1679 = vrot.lane.b32.xlu0 %v1603, 76
    %v1680 = vpop.permute.xlu0 %1679
    %1681 = vrot.lane.b32.xlu0 %v1604, 76
    %v1682 = vpop.permute.xlu0 %1681
    %1685 = vrot.lane.b32.xlu0 %v1603, 72
    %v1686 = vpop.permute.xlu0 %1685
    %1687 = vrot.lane.b32.xlu0 %v1604, 72
    %v1688 = vpop.permute.xlu0 %1687
    %1691 = vrot.lane.b32.xlu0 %v1603, 68
    %v1692 = vpop.permute.xlu0 %1691
    %1693 = vrot.lane.b32.xlu0 %v1604, 68
    %v1694 = vpop.permute.xlu0 %1693
    %v1697 = vcombine.low %v1603, %v1614
    %v1699 = vunpack.c.l.s4 1983009808
    %v1700 = vunpack.c.0.s8 %v1699
    %v1701 = vlaneseq
    %v1702 = vshrl.u32 %v1701, 7
    %v1703 = vsub.s32 %v1700, %v1702
    %v1704 = vrot.slane %v1697, %v1703
    %v1705 = vcombine.low %v1608, %v1620
    %v1707 = vunpack.c.l.s4 1983009808
    %v1708 = vunpack.c.0.s8 %v1707
    %v1709 = vlaneseq
    %v1710 = vshrl.u32 %v1709, 7
    %v1711 = vsub.s32 %v1708, %v1710
    %v1712 = vrot.slane %v1705, %v1711
    %v1713 = vcombine.low %v1626, %v1638
    %v1715 = vunpack.c.l.s4 1983009808
    %v1716 = vunpack.c.0.s8 %v1715
    %v1717 = vlaneseq
    %v1718 = vshrl.u32 %v1717, 7
    %v1719 = vsub.s32 %v1716, %v1718
    %v1720 = vrot.slane %v1713, %v1719
    %v1721 = vcombine.low %v1632, %v1644
    %v1723 = vunpack.c.l.s4 1983009808
    %v1724 = vunpack.c.0.s8 %v1723
    %v1725 = vlaneseq
    %v1726 = vshrl.u32 %v1725, 7
    %v1727 = vsub.s32 %v1724, %v1726
    %v1728 = vrot.slane %v1721, %v1727
    %v1729 = vcombine.low %v1704, %v1712
    %v1731 = vunpack.c.l.s4 1934713408
    %v1732 = vunpack.c.0.s8 %v1731
    %v1733 = vlaneseq
    %v1734 = vshrl.u32 %v1733, 7
    %v1735 = vsub.s32 %v1732, %v1734
    %v1736 = vrot.slane %v1729, %v1735
    %v1737 = vcombine.low %v1720, %v1728
    %v1739 = vunpack.c.l.s4 1934713408
    %v1740 = vunpack.c.0.s8 %v1739
    %v1741 = vlaneseq
    %v1742 = vshrl.u32 %v1741, 7
    %v1743 = vsub.s32 %v1740, %v1742
    %v1744 = vrot.slane %v1737, %v1743
    %v1745 = vcombine.low %v1736, %v1744
    %v1746 = vcombine.high %v1736, %v1744
    %v1747 = vcombine.low %v1650, %v1662
    %v1749 = vunpack.c.l.s4 1983009808
    %v1750 = vunpack.c.0.s8 %v1749
    %v1751 = vlaneseq
    %v1752 = vshrl.u32 %v1751, 7
    %v1753 = vsub.s32 %v1750, %v1752
    %v1754 = vrot.slane %v1747, %v1753
    %v1755 = vcombine.low %v1656, %v1668
    %v1757 = vunpack.c.l.s4 1983009808
    %v1758 = vunpack.c.0.s8 %v1757
    %v1759 = vlaneseq
    %v1760 = vshrl.u32 %v1759, 7
    %v1761 = vsub.s32 %v1758, %v1760
    %v1762 = vrot.slane %v1755, %v1761
    %v1763 = vcombine.low %v1674, %v1686
    %v1765 = vunpack.c.l.s4 1983009808
    %v1766 = vunpack.c.0.s8 %v1765
    %v1767 = vlaneseq
    %v1768 = vshrl.u32 %v1767, 7
    %v1769 = vsub.s32 %v1766, %v1768
    %v1770 = vrot.slane %v1763, %v1769
    %v1771 = vcombine.low %v1680, %v1692
    %v1773 = vunpack.c.l.s4 1983009808
    %v1774 = vunpack.c.0.s8 %v1773
    %v1775 = vlaneseq
    %v1776 = vshrl.u32 %v1775, 7
    %v1777 = vsub.s32 %v1774, %v1776
    %v1778 = vrot.slane %v1771, %v1777
    %v1779 = vcombine.low %v1754, %v1762
    %v1781 = vunpack.c.l.s4 1934713408
    %v1782 = vunpack.c.0.s8 %v1781
    %v1783 = vlaneseq
    %v1784 = vshrl.u32 %v1783, 7
    %v1785 = vsub.s32 %v1782, %v1784
    %v1786 = vrot.slane %v1779, %v1785
    %v1787 = vcombine.low %v1770, %v1778
    %v1789 = vunpack.c.l.s4 1934713408
    %v1790 = vunpack.c.0.s8 %v1789
    %v1791 = vlaneseq
    %v1792 = vshrl.u32 %v1791, 7
    %v1793 = vsub.s32 %v1790, %v1792
    %v1794 = vrot.slane %v1787, %v1793
    %v1795 = vcombine.low %v1786, %v1794
    %v1796 = vcombine.high %v1786, %v1794
    %v1797 = vcombine.low %v1604, %v1616
    %v1799 = vunpack.c.l.s4 1983009808
    %v1800 = vunpack.c.0.s8 %v1799
    %v1801 = vlaneseq
    %v1802 = vshrl.u32 %v1801, 7
    %v1803 = vsub.s32 %v1800, %v1802
    %v1804 = vrot.slane %v1797, %v1803
    %v1805 = vcombine.low %v1610, %v1622
    %v1807 = vunpack.c.l.s4 1983009808
    %v1808 = vunpack.c.0.s8 %v1807
    %v1809 = vlaneseq
    %v1810 = vshrl.u32 %v1809, 7
    %v1811 = vsub.s32 %v1808, %v1810
    %v1812 = vrot.slane %v1805, %v1811
    %v1813 = vcombine.low %v1628, %v1640
    %v1815 = vunpack.c.l.s4 1983009808
    %v1816 = vunpack.c.0.s8 %v1815
    %v1817 = vlaneseq
    %v1818 = vshrl.u32 %v1817, 7
    %v1819 = vsub.s32 %v1816, %v1818
    %v1820 = vrot.slane %v1813, %v1819
    %v1821 = vcombine.low %v1634, %v1646
    %v1823 = vunpack.c.l.s4 1983009808
    %v1824 = vunpack.c.0.s8 %v1823
    %v1825 = vlaneseq
    %v1826 = vshrl.u32 %v1825, 7
    %v1827 = vsub.s32 %v1824, %v1826
    %v1828 = vrot.slane %v1821, %v1827
    %v1829 = vcombine.low %v1804, %v1812
    %v1831 = vunpack.c.l.s4 1934713408
    %v1832 = vunpack.c.0.s8 %v1831
    %v1833 = vlaneseq
    %v1834 = vshrl.u32 %v1833, 7
    %v1835 = vsub.s32 %v1832, %v1834
    %v1836 = vrot.slane %v1829, %v1835
    %v1837 = vcombine.low %v1820, %v1828
    %v1839 = vunpack.c.l.s4 1934713408
    %v1840 = vunpack.c.0.s8 %v1839
    %v1841 = vlaneseq
    %v1842 = vshrl.u32 %v1841, 7
    %v1843 = vsub.s32 %v1840, %v1842
    %v1844 = vrot.slane %v1837, %v1843
    %v1845 = vcombine.low %v1836, %v1844
    %v1846 = vcombine.high %v1836, %v1844
    %v1847 = vcombine.low %v1652, %v1664
    %v1849 = vunpack.c.l.s4 1983009808
    %v1850 = vunpack.c.0.s8 %v1849
    %v1851 = vlaneseq
    %v1852 = vshrl.u32 %v1851, 7
    %v1853 = vsub.s32 %v1850, %v1852
    %v1854 = vrot.slane %v1847, %v1853
    %v1855 = vcombine.low %v1658, %v1670
    %v1857 = vunpack.c.l.s4 1983009808
    %v1858 = vunpack.c.0.s8 %v1857
    %v1859 = vlaneseq
    %v1860 = vshrl.u32 %v1859, 7
    %v1861 = vsub.s32 %v1858, %v1860
    %v1862 = vrot.slane %v1855, %v1861
    %v1863 = vcombine.low %v1676, %v1688
    %v1865 = vunpack.c.l.s4 1983009808
    %v1866 = vunpack.c.0.s8 %v1865
    %v1867 = vlaneseq
    %v1868 = vshrl.u32 %v1867, 7
    %v1869 = vsub.s32 %v1866, %v1868
    %v1870 = vrot.slane %v1863, %v1869
    %v1871 = vcombine.low %v1682, %v1694
    %v1873 = vunpack.c.l.s4 1983009808
    %v1874 = vunpack.c.0.s8 %v1873
    %v1875 = vlaneseq
    %v1876 = vshrl.u32 %v1875, 7
    %v1877 = vsub.s32 %v1874, %v1876
    %v1878 = vrot.slane %v1871, %v1877
    %v1879 = vcombine.low %v1854, %v1862
    %v1881 = vunpack.c.l.s4 1934713408
    %v1882 = vunpack.c.0.s8 %v1881
    %v1883 = vlaneseq
    %v1884 = vshrl.u32 %v1883, 7
    %v1885 = vsub.s32 %v1882, %v1884
    %v1886 = vrot.slane %v1879, %v1885
    %v1887 = vcombine.low %v1870, %v1878
    %v1889 = vunpack.c.l.s4 1934713408
    %v1890 = vunpack.c.0.s8 %v1889
    %v1891 = vlaneseq
    %v1892 = vshrl.u32 %v1891, 7
    %v1893 = vsub.s32 %v1890, %v1892
    %v1894 = vrot.slane %v1887, %v1893
    %v1895 = vcombine.low %v1886, %v1894
    %v1896 = vcombine.high %v1886, %v1894
    %v1897 = vsel %vm47, %v1745, 0.0
    %1898 = vadd.xlane.f32.xlu0 %v1897
    %v1899 = vpop.xlane.xlu0 %1898
    %v1900 = vsel %vm47, %v1795, 0.0
    %1901 = vadd.xlane.f32.xlu0 %v1900
    %v1902 = vpop.xlane.xlu0 %1901
    %v1903 = vsel %vm47, %v1746, 0.0
    %1904 = vadd.xlane.f32.xlu0 %v1903
    %v1905 = vpop.xlane.xlu0 %1904
    %v1906 = vsel %vm47, %v1796, 0.0
    %1907 = vadd.xlane.f32.xlu0 %v1906
    %v1908 = vpop.xlane.xlu0 %1907
    %v1909 = vsel %vm47, %v1845, 0.0
    %1910 = vadd.xlane.f32.xlu0 %v1909
    %v1911 = vpop.xlane.xlu0 %1910
    %v1912 = vsel %vm47, %v1895, 0.0
    %1913 = vadd.xlane.f32.xlu0 %v1912
    %v1914 = vpop.xlane.xlu0 %1913
    %v1915 = vsel %vm47, %v1846, 0.0
    %1916 = vadd.xlane.f32.xlu0 %v1915
    %v1917 = vpop.xlane.xlu0 %1916
    %v1918 = vsel %vm47, %v1896, 0.0
    %1919 = vadd.xlane.f32.xlu0 %v1918
    %v1920 = vpop.xlane.xlu0 %1919
    %v1925 = vlaneseq
    %v1926 = vshrl.u32 %v1925, 7
    %v1927 = vsub.s32 %v604, %v1926
    %v1928 = vrot.slane %v1899, %v1927
    %v1929 = vlaneseq
    %v1930 = vshrl.u32 %v1929, 7
    %v1931 = vsub.s32 %v656, %v1930
    %v1932 = vrot.slane %v1902, %v1931
    %v1933 = vsel %vm1311, %v1932, %v1928
    %v1934 = vlaneseq
    %v1935 = vshrl.u32 %v1934, 7
    %v1936 = vsub.s32 %v604, %v1935
    %v1937 = vrot.slane %v1911, %v1936
    %v1938 = vlaneseq
    %v1939 = vshrl.u32 %v1938, 7
    %v1940 = vsub.s32 %v656, %v1939
    %v1941 = vrot.slane %v1914, %v1940
    %v1942 = vsel %vm1311, %v1941, %v1937
    %v1949 = vlaneseq
    %v1950 = vshrl.u32 %v1949, 7
    %v1951 = vsub.s32 %v1352, %v1950
    %v1952 = vrot.slane %v1905, %v1951
    %v1953 = vlaneseq
    %v1954 = vshrl.u32 %v1953, 7
    %v1955 = vsub.s32 %v1357, %v1954
    %v1956 = vrot.slane %v1908, %v1955
    %v1957 = vsel %vm1362, %v1956, %v1952
    %v1958 = vlaneseq
    %v1959 = vshrl.u32 %v1958, 7
    %v1960 = vsub.s32 %v1352, %v1959
    %v1961 = vrot.slane %v1917, %v1960
    %v1962 = vlaneseq
    %v1963 = vshrl.u32 %v1962, 7
    %v1964 = vsub.s32 %v1357, %v1963
    %v1965 = vrot.slane %v1920, %v1964
    %v1966 = vsel %vm1362, %v1965, %v1961
    %v1969 = vsel %vm712, %v1933, %v1957
    %v1970 = vsel %vm712, %v1942, %v1966
    %v1971 = vpack.c.bf16 %v1969, %v1969
    %v1972 = vpack.c.bf16 %v1970, %v1970
    %v1973 = vld [vmem:[%s10] sm:$0xf]
    %v1974 = vld [vmem:[%s10 + $0x4] sm:$0xf]
    %v1975 = vld [vmem:[%s10 + $0x8] sm:$0xf]
    %v1976 = vld [vmem:[%s10 + $0xc] sm:$0xf]
    %v1977 = vld [vmem:[%s11] sm:$0x1]
    %v1979 = vlaneseq
    %v1980 = vshrl.u32 %v1979, 7
    %v1981 = vsub.s32 0, %v1980
    %v1982 = vrot.slane %v1977, %v1981
    %v1986 = vunpack.c.l.b16 %v1971
    %v1987 = vunpack.c.l.b16 %v1972
    %v1988 = vrot.slane %v1987, 7
    %v1989 = vsel %vm637, %v1988, %v1986
    %v1990 = vpack.c.b16 %v1989, %v1989
    %v1995 = vunpack.c.l.b16 %v1973
    %v1996 = vunpack.c.l.b16 %v1974
    %v1997 = vunpack.c.l.b16 %v1975
    %v1998 = vunpack.c.l.b16 %v1976
    %v1999 = vpack.c.b16 %v1996, %v1995
    %v2000 = vpack.c.b16 %v1998, %v1997
    %v2004 = vsel %vm96, %v1990, 0
    %2006 = vmatprep.subr.bf16.mxu0 0
    %2007 = vmatpush1.bf16.msra.mxu0 %v1999
    %2008 = vmatprep.subr.bf16.mxu0 0
    %2009 = vmatpush1.bf16.msra.mxu0 %v2000
    %2010 = vmatprep.subr.bf16.mxu0 0
    %2011 = vmatpush1.bf16.msra.mxu0 0
    %2012 = vmatprep.subr.bf16.mxu0 0
    %2013 = vmatpush1.bf16.msra.mxu0 0
    %2014 = vmatprep.subr.bf16.mxu0 0
    %2015 = vmatpush1.bf16.msra.mxu0 0
    %2016 = vmatprep.subr.bf16.mxu0 0
    %2017 = vmatpush1.bf16.msra.mxu0 0
    %2018 = vmatprep.subr.bf16.mxu0 0
    %2019 = vmatpush1.bf16.msra.mxu0 0
    %2020 = vmatprep.subr.bf16.mxu0 0
    %2021 = vmatpush1.bf16.msra.mxu0 0
    %2022 = vmatprep.subr.bf16.mxu0 0
    %2023 = vmatpush1.bf16.msra.mxu0 0
    %2024 = vmatprep.subr.bf16.mxu0 0
    %2025 = vmatpush1.bf16.msra.mxu0 0
    %2026 = vmatprep.subr.bf16.mxu0 0
    %2027 = vmatpush1.bf16.msra.mxu0 0
    %2028 = vmatprep.subr.bf16.mxu0 0
    %2029 = vmatpush1.bf16.msra.mxu0 0
    %2030 = vmatprep.subr.bf16.mxu0 0
    %2031 = vmatpush1.bf16.msra.mxu0 0
    %2032 = vmatprep.subr.bf16.mxu0 0
    %2033 = vmatpush1.bf16.msra.mxu0 0
    %2034 = vmatprep.subr.bf16.mxu0 0
    %2035 = vmatpush1.bf16.msra.mxu0 0
    %2036 = vmatprep.subr.bf16.mxu0 0
    %2037 = vmatpush1.bf16.msra.mxu0 0
    %2038 = vmatprep.mubr.bf16.mxu0 0
    %2039 = vmatmul.mubr.bf16.gmra.mrb[0].mxu0 %v2004
    %v2040 = vpop.f32.mrb[0].mxu0
    %v2041 = vadd.f32 %v1982, %v2040
    %v2042 = vpop.f32.mrb[0].mxu0
    %v2043 = vpop.f32.mrb[0].mxu0
    %v2044 = vpop.f32.mrb[0].mxu0
    %2045 = vdwg.mxu0
    %2046 = vst [vmem:[#allocation2] sm:$0x3] %v2041
    // Predicated region
    $region50: #{_lambda_.1} parent=1 // pred_check
      _
    $region51: #{_lambda_.1} parent=1 // pred_check_branch
      %2048 = sbr.rel (0) target = $region53
    $region52: #{_lambda_.1} parent=1 // pred_region
      %s2050 = ssub.s32 32, 32
      %2051 = vsyncadd [#allocation3], %s2050
      %s2053 = sshll.u32 [#allocation2], 4
      %s2054 = int_to_ptr.vmem [resolvable:$true] %s2053
      %2056 = dma.vmem_to_hbm [thread:$0]  %s2054, 32, %s12, [#allocation3]
    $region53: #{_lambda_.1} parent=1 // pred_fallthru
      _
    // Predicated region
    $region54: #{_lambda_.1} parent=1 // pred_check
      _
    $region55: #{_lambda_.1} parent=1 // pred_check_branch
      %2058 = sbr.rel (0) target = $region57
    $region56: #{_lambda_.1} parent=1 // pred_region
      %2059 = dma.done [#allocation3], 32
    $region57: #{_lambda_.1} parent=1 // pred_fallthru
      _
    %2060 = vsyncpa [#allocation3], 1

</llo_original>
